<compile_context>
chip_gen: v5e
topology: v5e:2x2
jax: 0.10.0
libtpu: 0.0.40
codegen_flags: <defaults>
</compile_context>

<pallas_src>
import math

import jax
import jax.numpy as jnp
from jax.experimental import pallas as pl
from jax.experimental.pallas import tpu as pltpu

EPS_BN = 1e-5
LANE = 128          # TPU lane width
BF16_SUBLANE = 16   # bf16 sublane pack; batch rows padded to a multiple of this
VMEM_SPEC = pl.BlockSpec(memory_space=pltpu.MemorySpace.VMEM)


# ----------------------------------------------------------------------------
# Fused Pallas kernel: trunk MLP + combined head, one call per branch.
# Operands: x (padB, n_fc) f32, W_stack (n_lin, n_fc, n_fc) bf16,
#           B_stack (n_lin, 1, n_fc) f32, W_head (n_fc, 256) bf16,
#           b_head (1, 256) f32  ->  out (padB, 256) f32.
# ----------------------------------------------------------------------------
def make_fused_trunk_head_kernel(n_res_layers):
    def kernel(x_ref, w_ref, b_ref, hw_ref, hb_ref, out_ref):
        def lin(h, i):
            # bf16 MXU inputs, f32 accumulation, f32 bias add (v5e-safe).
            return jnp.dot(h.astype(jnp.bfloat16), w_ref[i],
                           preferred_element_type=jnp.float32) + b_ref[i]

        h = jnp.maximum(lin(x_ref[...], 0), 0.0)        # ConvBNLayer (BN folded)
        li = 1
        for _ in range(n_res_layers):                   # ResLayer x N
            t = jnp.maximum(lin(h, li), 0.0)            # conv1+bn1+relu
            t = jnp.maximum(lin(t, li + 1), 0.0)        # conv2+bn2+relu
            t = lin(t, li + 2)                          # conv3+bn3
            h = jnp.maximum(t + h, 0.0)                 # skip + relu (f32)
            li += 3

        # Single combined head matmul: lanes [0:128] = [alpha | rot | 0-pad],
        # lanes [128:256] = chained shape layer (alpha @ shape precombined in
        # f32 at init).  One lane-dense unmasked (padB, 256) store.
        out_ref[...] = jnp.dot(h.astype(jnp.bfloat16), hw_ref[...],
                               preferred_element_type=jnp.float32) + hb_ref[...]

    return kernel


def fused_branch_forward(x, w_stack, b_stack, w_head, b_head, n_res_layers):
    """x: (ba, dim_in) f32 -> (heads (ba, 128), shape_flat (ba, 128)) f32."""
    ba, din = x.shape
    n_lin, n_fc, _ = w_stack.shape
    assert din <= n_fc
    pad_ba = ((ba + BF16_SUBLANE - 1) // BF16_SUBLANE) * BF16_SUBLANE
    x = jnp.pad(x.astype(jnp.float32), ((0, pad_ba - ba), (0, n_fc - din)))

    flops = 2 * pad_ba * n_fc * (n_lin * n_fc + 2 * LANE)
    bytes_accessed = (x.size * 4 + w_stack.size * 2 + b_stack.size * 4
                      + w_head.size * 2 + b_head.size * 4
                      + pad_ba * 2 * LANE * 4)

    out = pl.pallas_call(
        make_fused_trunk_head_kernel(n_res_layers),
        out_shape=jax.ShapeDtypeStruct((pad_ba, 2 * LANE), jnp.float32),
        in_specs=[VMEM_SPEC] * 5,
        out_specs=VMEM_SPEC,
        cost_estimate=pl.CostEstimate(flops=flops, transcendentals=0,
                                      bytes_accessed=bytes_accessed),
    )(x, w_stack, b_stack, w_head, b_head)
    return out[:ba, :LANE], out[:ba, LANE:]


# ----------------------------------------------------------------------------
# Deterministic parameter construction (mirrors the torch __init__),
# with eval-mode BatchNorm folded and weights packed/stacked for the kernel.
# ----------------------------------------------------------------------------
def init_conv1x1(key, cin, cout, std=0.01):
    w = jax.random.normal(key, (cout, cin), dtype=jnp.float32) * std
    b = jnp.zeros((cout,), jnp.float32)
    return w, b


def init_bn(key, c):
    gamma = jax.random.uniform(key, (c,), dtype=jnp.float32)  # .uniform_(0, 1)
    beta = jnp.zeros((c,), jnp.float32)
    run_mean = jnp.zeros((c,), jnp.float32)
    run_var = jnp.ones((c,), jnp.float32)
    return gamma, beta, run_mean, run_var


def fold_conv_bn(w, b, bn):
    # Exact for eval-mode BN with whatever running stats are provided.
    gamma, beta, rm, rv = bn
    s = gamma / jnp.sqrt(rv + EPS_BN)
    return w * s[:, None], s * (b - rm) + beta


def _pad_wt(w, n):
    """(cout, cin) torch-layout weight -> zero-padded transposed (n, n)."""
    wt = w.T  # (cin, cout)
    return jnp.zeros((n, n), jnp.float32).at[:wt.shape[0], :wt.shape[1]].set(wt)


def _pad_b(b, n):
    return jnp.zeros((n,), jnp.float32).at[:b.shape[0]].set(b)


def make_trunk_stack(key, dim_in, n_fc, n_layers):
    """All trunk linears (BN folded) stacked into one (n_lin, n_fc, n_fc) bf16
    weight buffer and one (n_lin, 1, n_fc) f32 bias buffer.  Unused rows/cols
    are zero, so padded lanes stay exactly zero through ReLU and skips."""
    assert dim_in <= n_fc
    ws, bs = [], []
    k1, kbn1, *kres = jax.random.split(key, 2 + n_layers)
    w, b = fold_conv_bn(*init_conv1x1(k1, dim_in, n_fc), init_bn(kbn1, n_fc))
    ws.append(_pad_wt(w, n_fc)); bs.append(_pad_b(b, n_fc))
    p = n_fc // 4
    for kr in kres:
        ks = jax.random.split(kr, 6)
        for cin, cout, kw, kbn in ((n_fc, p, ks[0], ks[1]),
                                   (p, p, ks[2], ks[3]),
                                   (p, 4 * p, ks[4], ks[5])):
            w, b = fold_conv_bn(*init_conv1x1(kw, cin, cout), init_bn(kbn, cout))
            ws.append(_pad_wt(w, n_fc)); bs.append(_pad_b(b, n_fc))
    w_stack = jnp.stack(ws).astype(jnp.bfloat16)        # (n_lin, n_fc, n_fc)
    b_stack = jnp.stack(bs)[:, None, :]                 # (n_lin, 1, n_fc) f32
    return w_stack, b_stack


def make_combined_head(n_fc, basis, out_dim, alpha_wb, shape_wb, rot_wb=None):
    """One (n_fc, 256) bf16 head weight + (1, 256) f32 bias.
    Lanes [0:128]   : [alpha | rot | 0-pad]       (the `heads` slab)
    Lanes [128:256] : alpha chained with the shape layer, precombined in f32:
        shape_flat = feats @ (alpha_w.T @ shape_w.T) + (alpha_b @ shape_w.T + shape_b)
    so the rot / padding lanes cannot leak into the shape output."""
    assert basis + 3 <= LANE and out_dim <= LANE
    aw, ab = alpha_wb              # (basis, n_fc), (basis,)
    sw, sb = shape_wb              # (out_dim, basis), (out_dim,)
    hw = jnp.zeros((n_fc, LANE), jnp.float32).at[:, :basis].set(aw.T)
    hb = jnp.zeros((LANE,), jnp.float32).at[:basis].set(ab)
    if rot_wb is not None:
        rw, rb = rot_wb
        hw = hw.at[:, basis:basis + 3].set(rw.T)
        hb = hb.at[basis:basis + 3].set(rb)
    cw2 = jnp.zeros((n_fc, LANE), jnp.float32).at[:, :out_dim].set(aw.T @ sw.T)
    cb2 = jnp.zeros((LANE,), jnp.float32).at[:out_dim].set(ab @ sw.T + sb)
    w_head = jnp.concatenate([hw, cw2], axis=1).astype(jnp.bfloat16)  # (n_fc, 256)
    b_head = jnp.concatenate([hb, cb2])[None, :]                      # (1, 256) f32
    return w_head, b_head


# ----------------------------------------------------------------------------
# Small math helpers (glue; tiny 3x3 / scalar-loss work stays in plain JAX,
# all compiled under the single jit over forward()).
# ----------------------------------------------------------------------------
def masked_kp_mean(kp_loc, kp_vis):
    vis_mass = jnp.maximum(kp_vis.sum(1), 1e-4)
    return (kp_loc * kp_vis[:, None, :]).sum(2) / vis_mass[:, None]


def safe_sqrt(a, eps=1e-4):
    return jnp.sqrt(jnp.maximum(a, 0.0) + eps)


def avg_l2_huber(x, y, mask=None, scaling=0.03):
    diff = x - y
    dist = (diff * diff).sum(1)
    dist = (safe_sqrt(1.0 + dist / (scaling * scaling), eps=1e-4) - 1.0) * scaling
    if mask is not None:
        dist = (dist * mask).sum(1) / jnp.maximum(mask.sum(1), 1.0)
    else:
        dist = dist.mean(1)
    return dist.mean()


def hat(v):
    z = jnp.zeros_like(v[:, 0])
    return jnp.stack([
        jnp.stack([z, -v[:, 2], v[:, 1]], axis=-1),
        jnp.stack([v[:, 2], z, -v[:, 0]], axis=-1),
        jnp.stack([-v[:, 1], v[:, 0], z], axis=-1),
    ], axis=-2)


def so3_exponential_map(log_rot, eps=1e-4):
    # Note: uses 1/(phi+eps) smoothing for small angles (as in the c3dpo repo).
    nrms = (log_rot * log_rot).sum(1)
    phis = jnp.sqrt(jnp.maximum(nrms, 0.0))
    phisi = 1.0 / (phis + eps)
    fac1 = phisi * jnp.sin(phis)
    fac2 = phisi * phisi * (1.0 - jnp.cos(phis))
    ss = hat(log_rot)
    return (fac1[:, None, None] * ss
            + fac2[:, None, None] * jnp.einsum('bij,bjk->bik', ss, ss)
            + jnp.eye(3, dtype=log_rot.dtype)[None])


def rand_rot(key, n, max_rot_angle=math.pi, axes=(1.0, 1.0, 1.0)):
    k1, k2 = jax.random.split(key)
    axis = jax.random.normal(k1, (n, 3), dtype=jnp.float32) * jnp.asarray(axes, jnp.float32)[None]
    axis = axis / jnp.maximum(jnp.linalg.norm(axis, axis=1, keepdims=True), 1e-12)
    angle = jax.random.uniform(k2, (n,), dtype=jnp.float32, minval=0.0, maxval=max_rot_angle)
    return so3_exponential_map(axis * angle[:, None])


# ----------------------------------------------------------------------------
# C3DPO (orthographic, to_mean norm, kp_total_count loss), eval-mode forward.
# ----------------------------------------------------------------------------
class C3DPOPallas:
    def __init__(self, key, n_keypoints=8, shape_basis_size=10,
                 n_fully_connected=128, n_layers=2, huber_scaling=0.01,
                 keypoint_rescale=1.0, n_rand_samples=4,
                 canon_rot_angle=math.pi, canon_n_layers=2):
        self.n_keypoints = n_keypoints
        self.shape_basis_size = shape_basis_size
        self.n_fully_connected = n_fully_connected
        self.n_layers = n_layers
        self.canon_n_layers = canon_n_layers
        self.huber_scaling = huber_scaling
        self.keypoint_rescale = keypoint_rescale
        self.n_rand_samples = n_rand_samples
        self.canon_rot_angle = canon_rot_angle

        keys = jax.random.split(key, 6)
        dim_in = 3 * n_keypoints
        self.phi_w, self.phi_b = make_trunk_stack(keys[0], dim_in, n_fully_connected, n_layers)
        self.psi_w, self.psi_b = make_trunk_stack(keys[1], dim_in, n_fully_connected, canon_n_layers)
        alpha = init_conv1x1(keys[2], n_fully_connected, shape_basis_size)
        shape = init_conv1x1(keys[3], shape_basis_size, 3 * n_keypoints)
        rot = init_conv1x1(keys[4], n_fully_connected, 3)
        alpha_psi = init_conv1x1(keys[5], n_fully_connected, shape_basis_size)
        # shape layer is shared between phi and psi (as in the torch model)
        self.phi_hw, self.phi_hb = make_combined_head(
            n_fully_connected, shape_basis_size, 3 * n_keypoints, alpha, shape, rot_wb=rot)
        self.psi_hw, self.psi_hb = make_combined_head(
            n_fully_connected, shape_basis_size, 3 * n_keypoints, alpha_psi, shape)
        # Whole forward (both fused pallas_calls + the small XLA glue) compiled
        # into one executable -> no per-op host dispatch.
        self.forward = jax.jit(self._forward)

    # --- run_phi (eval mode: no z_augment/z_equivariance) ---
    def run_phi(self, kp_loc, kp_vis):
        ba = kp_loc.shape[0]
        n_kp, basis = self.n_keypoints, self.shape_basis_size
        kp_loc_masked = kp_loc * kp_vis[:, None, :]
        l1_input = jnp.concatenate(
            [kp_loc_masked.reshape(ba, 2 * n_kp), kp_vis], axis=1)
        heads, shape_flat = fused_branch_forward(
            l1_input, self.phi_w, self.phi_b, self.phi_hw, self.phi_hb, self.n_layers)
        shape_coeff = heads[:, :basis]
        r_log = heads[:, basis:basis + 3]
        shape_canonical = shape_flat[:, :3 * n_kp].reshape(ba, 3, n_kp)
        rot = so3_exponential_map(r_log)
        trans = jnp.zeros((ba, 3), jnp.float32)
        scale = jnp.ones((ba,), jnp.float32)
        shape_camera_coord = jnp.einsum(
            'bij,bjk->bik', rot, scale[:, None, None] * shape_canonical) + trans[:, :, None]
        return {'R_log': r_log, 'R': rot, 'scale': scale, 'T': trans,
                'shape_camera_coord': shape_camera_coord,
                'shape_coeff': shape_coeff, 'shape_canonical': shape_canonical}

    def run_psi(self, shape_canonical):
        ba = shape_canonical.shape[0]
        n_kp, basis = self.n_keypoints, self.shape_basis_size
        l1_input = shape_canonical.reshape(ba, 3 * n_kp)
        heads, shape_flat = fused_branch_forward(
            l1_input, self.psi_w, self.psi_b, self.psi_hw, self.psi_hb, self.canon_n_layers)
        return {'shape_coeff': heads[:, :basis],
                'shape_canonical': shape_flat[:, :3 * n_kp].reshape(ba, 3, n_kp)}

    def canonicalization_loss(self, phi_out, rng):
        shape_canonical = phi_out['shape_canonical']
        ba = shape_canonical.shape[0]
        n_s = self.n_rand_samples
        r_rand = rand_rot(rng, ba * n_s, max_rot_angle=self.canon_rot_angle)
        unrotated = jnp.tile(shape_canonical, (n_s, 1, 1))
        rotated = jnp.einsum('bij,bjk->bik', r_rand, unrotated)
        psi_out = self.run_psi(rotated)
        l_canon = avg_l2_huber(psi_out['shape_canonical'], unrotated,
                               scaling=self.huber_scaling)
        psi_out = {k: v.reshape((n_s, ba) + v.shape[1:]) for k, v in psi_out.items()}
        return l_canon, psi_out

    def _forward(self, kp_loc, kp_vis, rng):
        ba, kp_dim, n_kp = kp_loc.shape
        assert kp_dim == 2 and n_kp == self.n_keypoints
        preds = {}

        kp_loc_cal = kp_loc  # orthographic projection: no calibration
        kp_mean = masked_kp_mean(kp_loc_cal, kp_vis)
        kp_loc_norm = (kp_loc_cal - kp_mean[:, :, None]) * self.keypoint_rescale
        preds['kp_loc_norm'] = kp_loc_norm
        preds['kp_mean'] = kp_mean

        preds['phi'] = self.run_phi(kp_loc_norm, kp_vis)
        preds['l_canonicalization'], preds['psi'] = self.canonicalization_loss(
            preds['phi'], rng)

        shape_camera_coord = preds['phi']['shape_camera_coord']
        kp_reprojected = shape_camera_coord[:, 0:2, :]
        depth = shape_camera_coord[:, 2:3, :]
        preds['kp_reprojected'] = kp_reprojected

        # reprojection_normalization == 'kp_total_count'
        def flatten_(x):
            return jnp.transpose(x, (1, 2, 0)).reshape(1, 2, n_kp * ba)

        mask = jnp.transpose(kp_vis, (1, 0)).reshape(1, -1)
        preds['l_reprojection'] = avg_l2_huber(
            flatten_(kp_reprojected), flatten_(kp_loc_norm),
            mask=mask, scaling=self.huber_scaling)

        kp_reprojected_image = kp_reprojected * (1.0 / self.keypoint_rescale) \
            + kp_mean[:, :, None]
        # replace_keypoints_with_input (eval mode)
        kp_reprojected_image = (1.0 - kp_vis[:, None, :]) * kp_reprojected_image \
            + kp_vis[:, None, :] * kp_loc_cal
        preds['kp_reprojected_image'] = kp_reprojected_image

        shape_image_coord = jnp.concatenate(
            [kp_reprojected_image, depth / self.keypoint_rescale], axis=1)
        preds['shape_image_coord'] = shape_image_coord

        preds['objective'] = 1.0 * preds['l_reprojection'] \
            + 1.0 * preds['l_canonicalization']
        return preds


if __name__ == "__main__":
    key = jax.random.PRNGKey(0)
    k_param, k_kp, k_vis, k_canon = jax.random.split(key, 4)

    ba, n_kp = 2, 8
    model = C3DPOPallas(k_param, n_keypoints=n_kp, shape_basis_size=10,
                        n_fully_connected=128, n_layers=2,
                        n_rand_samples=4, canon_n_layers=2)

    kp_loc = jax.random.normal(k_kp, (ba, 2, n_kp), dtype=jnp.float32)
    kp_vis = jax.random.bernoulli(k_vis, 0.8, (ba, n_kp)).astype(jnp.float32)

    preds = model.forward(kp_loc, kp_vis, k_canon)
    obj = jax.block_until_ready(preds['objective'])
    jax.block_until_ready(preds['shape_image_coord'])
    assert bool(jnp.isfinite(obj)), "nans!"
    print("KERNEL_OK")
</pallas_src>

<mosaic_0001>
module attributes {stable_mosaic.version = 11 : i64} {
  func.func @kernel(%arg0: memref<16x128xf32, #tpu.memory_space<vmem>>, %arg1: memref<7x128x128xbf16, #tpu.memory_space<vmem>>, %arg2: memref<7x1x128xf32, #tpu.memory_space<vmem>>, %arg3: memref<128x256xbf16, #tpu.memory_space<vmem>>, %arg4: memref<1x256xf32, #tpu.memory_space<vmem>>, %arg5: memref<16x256xf32, #tpu.memory_space<vmem>>) attributes {dimension_semantics = [], scalar_prefetch = 0 : i64, scratch_operands = 0 : i64, tpu.core_type = #tpu.core_type<tc>} {
    %c0 = arith.constant 0 : index
    %c0_0 = arith.constant 0 : index
    %0 = vector.load %arg0[%c0, %c0_0] : memref<16x128xf32, #tpu.memory_space<vmem>>, vector<16x128xf32>
    %1 = arith.truncf %0 : vector<16x128xf32> to vector<16x128xbf16>
    %c0_1 = arith.constant 0 : index
    %c0_2 = arith.constant 0 : index
    %c0_3 = arith.constant 0 : index
    %2 = vector.load %arg1[%c0_1, %c0_2, %c0_3] : memref<7x128x128xbf16, #tpu.memory_space<vmem>>, vector<1x128x128xbf16>
    %3 = vector.shape_cast %2 : vector<1x128x128xbf16> to vector<128x128xbf16>
    %cst = arith.constant dense<0.000000e+00> : vector<16x128xf32>
    %4 = tpu.matmul %1, %3, %cst {dimension_numbers = #tpu.dot_dimension_numbers<[1], [0], [0], [1], [0, 0, 1, 1], [], []>} : vector<16x128xbf16>, vector<128x128xbf16>, vector<16x128xf32> -> vector<16x128xf32>
    %c0_4 = arith.constant 0 : index
    %c0_5 = arith.constant 0 : index
    %c0_6 = arith.constant 0 : index
    %5 = vector.load %arg2[%c0_4, %c0_5, %c0_6] : memref<7x1x128xf32, #tpu.memory_space<vmem>>, vector<1x1x128xf32>
    %6 = vector.shape_cast %5 : vector<1x1x128xf32> to vector<1x128xf32>
    %7 = vector.broadcast %6 : vector<1x128xf32> to vector<16x128xf32>
    %8 = arith.addf %4, %7 : vector<16x128xf32>
    %cst_7 = arith.constant 0.000000e+00 : f32
    %9 = vector.broadcast %cst_7 : f32 to vector<16x128xf32>
    %10 = arith.maximumf %8, %9 : vector<16x128xf32>
    %11 = arith.truncf %10 : vector<16x128xf32> to vector<16x128xbf16>
    %c1 = arith.constant 1 : index
    %c0_8 = arith.constant 0 : index
    %c0_9 = arith.constant 0 : index
    %12 = vector.load %arg1[%c1, %c0_8, %c0_9] : memref<7x128x128xbf16, #tpu.memory_space<vmem>>, vector<1x128x128xbf16>
    %13 = vector.shape_cast %12 : vector<1x128x128xbf16> to vector<128x128xbf16>
    %cst_10 = arith.constant dense<0.000000e+00> : vector<16x128xf32>
    %14 = tpu.matmul %11, %13, %cst_10 {dimension_numbers = #tpu.dot_dimension_numbers<[1], [0], [0], [1], [0, 0, 1, 1], [], []>} : vector<16x128xbf16>, vector<128x128xbf16>, vector<16x128xf32> -> vector<16x128xf32>
    %c1_11 = arith.constant 1 : index
    %c0_12 = arith.constant 0 : index
    %c0_13 = arith.constant 0 : index
    %15 = vector.load %arg2[%c1_11, %c0_12, %c0_13] : memref<7x1x128xf32, #tpu.memory_space<vmem>>, vector<1x1x128xf32>
    %16 = vector.shape_cast %15 : vector<1x1x128xf32> to vector<1x128xf32>
    %17 = vector.broadcast %16 : vector<1x128xf32> to vector<16x128xf32>
    %18 = arith.addf %14, %17 : vector<16x128xf32>
    %cst_14 = arith.constant 0.000000e+00 : f32
    %19 = vector.broadcast %cst_14 : f32 to vector<16x128xf32>
    %20 = arith.maximumf %18, %19 : vector<16x128xf32>
    %21 = arith.truncf %20 : vector<16x128xf32> to vector<16x128xbf16>
    %c2 = arith.constant 2 : index
    %c0_15 = arith.constant 0 : index
    %c0_16 = arith.constant 0 : index
    %22 = vector.load %arg1[%c2, %c0_15, %c0_16] : memref<7x128x128xbf16, #tpu.memory_space<vmem>>, vector<1x128x128xbf16>
    %23 = vector.shape_cast %22 : vector<1x128x128xbf16> to vector<128x128xbf16>
    %cst_17 = arith.constant dense<0.000000e+00> : vector<16x128xf32>
    %24 = tpu.matmul %21, %23, %cst_17 {dimension_numbers = #tpu.dot_dimension_numbers<[1], [0], [0], [1], [0, 0, 1, 1], [], []>} : vector<16x128xbf16>, vector<128x128xbf16>, vector<16x128xf32> -> vector<16x128xf32>
    %c2_18 = arith.constant 2 : index
    %c0_19 = arith.constant 0 : index
    %c0_20 = arith.constant 0 : index
    %25 = vector.load %arg2[%c2_18, %c0_19, %c0_20] : memref<7x1x128xf32, #tpu.memory_space<vmem>>, vector<1x1x128xf32>
    %26 = vector.shape_cast %25 : vector<1x1x128xf32> to vector<1x128xf32>
    %27 = vector.broadcast %26 : vector<1x128xf32> to vector<16x128xf32>
    %28 = arith.addf %24, %27 : vector<16x128xf32>
    %cst_21 = arith.constant 0.000000e+00 : f32
    %29 = vector.broadcast %cst_21 : f32 to vector<16x128xf32>
    %30 = arith.maximumf %28, %29 : vector<16x128xf32>
    %31 = arith.truncf %30 : vector<16x128xf32> to vector<16x128xbf16>
    %c3 = arith.constant 3 : index
    %c0_22 = arith.constant 0 : index
    %c0_23 = arith.constant 0 : index
    %32 = vector.load %arg1[%c3, %c0_22, %c0_23] : memref<7x128x128xbf16, #tpu.memory_space<vmem>>, vector<1x128x128xbf16>
    %33 = vector.shape_cast %32 : vector<1x128x128xbf16> to vector<128x128xbf16>
    %cst_24 = arith.constant dense<0.000000e+00> : vector<16x128xf32>
    %34 = tpu.matmul %31, %33, %cst_24 {dimension_numbers = #tpu.dot_dimension_numbers<[1], [0], [0], [1], [0, 0, 1, 1], [], []>} : vector<16x128xbf16>, vector<128x128xbf16>, vector<16x128xf32> -> vector<16x128xf32>
    %c3_25 = arith.constant 3 : index
    %c0_26 = arith.constant 0 : index
    %c0_27 = arith.constant 0 : index
    %35 = vector.load %arg2[%c3_25, %c0_26, %c0_27] : memref<7x1x128xf32, #tpu.memory_space<vmem>>, vector<1x1x128xf32>
    %36 = vector.shape_cast %35 : vector<1x1x128xf32> to vector<1x128xf32>
    %37 = vector.broadcast %36 : vector<1x128xf32> to vector<16x128xf32>
    %38 = arith.addf %34, %37 : vector<16x128xf32>
    %39 = arith.addf %38, %10 : vector<16x128xf32>
    %cst_28 = arith.constant 0.000000e+00 : f32
    %40 = vector.broadcast %cst_28 : f32 to vector<16x128xf32>
    %41 = arith.maximumf %39, %40 : vector<16x128xf32>
    %42 = arith.truncf %41 : vector<16x128xf32> to vector<16x128xbf16>
    %c4 = arith.constant 4 : index
    %c0_29 = arith.constant 0 : index
    %c0_30 = arith.constant 0 : index
    %43 = vector.load %arg1[%c4, %c0_29, %c0_30] : memref<7x128x128xbf16, #tpu.memory_space<vmem>>, vector<1x128x128xbf16>
    %44 = vector.shape_cast %43 : vector<1x128x128xbf16> to vector<128x128xbf16>
    %cst_31 = arith.constant dense<0.000000e+00> : vector<16x128xf32>
    %45 = tpu.matmul %42, %44, %cst_31 {dimension_numbers = #tpu.dot_dimension_numbers<[1], [0], [0], [1], [0, 0, 1, 1], [], []>} : vector<16x128xbf16>, vector<128x128xbf16>, vector<16x128xf32> -> vector<16x128xf32>
    %c4_32 = arith.constant 4 : index
    %c0_33 = arith.constant 0 : index
    %c0_34 = arith.constant 0 : index
    %46 = vector.load %arg2[%c4_32, %c0_33, %c0_34] : memref<7x1x128xf32, #tpu.memory_space<vmem>>, vector<1x1x128xf32>
    %47 = vector.shape_cast %46 : vector<1x1x128xf32> to vector<1x128xf32>
    %48 = vector.broadcast %47 : vector<1x128xf32> to vector<16x128xf32>
    %49 = arith.addf %45, %48 : vector<16x128xf32>
    %cst_35 = arith.constant 0.000000e+00 : f32
    %50 = vector.broadcast %cst_35 : f32 to vector<16x128xf32>
    %51 = arith.maximumf %49, %50 : vector<16x128xf32>
    %52 = arith.truncf %51 : vector<16x128xf32> to vector<16x128xbf16>
    %c5 = arith.constant 5 : index
    %c0_36 = arith.constant 0 : index
    %c0_37 = arith.constant 0 : index
    %53 = vector.load %arg1[%c5, %c0_36, %c0_37] : memref<7x128x128xbf16, #tpu.memory_space<vmem>>, vector<1x128x128xbf16>
    %54 = vector.shape_cast %53 : vector<1x128x128xbf16> to vector<128x128xbf16>
    %cst_38 = arith.constant dense<0.000000e+00> : vector<16x128xf32>
    %55 = tpu.matmul %52, %54, %cst_38 {dimension_numbers = #tpu.dot_dimension_numbers<[1], [0], [0], [1], [0, 0, 1, 1], [], []>} : vector<16x128xbf16>, vector<128x128xbf16>, vector<16x128xf32> -> vector<16x128xf32>
    %c5_39 = arith.constant 5 : index
    %c0_40 = arith.constant 0 : index
    %c0_41 = arith.constant 0 : index
    %56 = vector.load %arg2[%c5_39, %c0_40, %c0_41] : memref<7x1x128xf32, #tpu.memory_space<vmem>>, vector<1x1x128xf32>
    %57 = vector.shape_cast %56 : vector<1x1x128xf32> to vector<1x128xf32>
    %58 = vector.broadcast %57 : vector<1x128xf32> to vector<16x128xf32>
    %59 = arith.addf %55, %58 : vector<16x128xf32>
    %cst_42 = arith.constant 0.000000e+00 : f32
    %60 = vector.broadcast %cst_42 : f32 to vector<16x128xf32>
    %61 = arith.maximumf %59, %60 : vector<16x128xf32>
    %62 = arith.truncf %61 : vector<16x128xf32> to vector<16x128xbf16>
    %c6 = arith.constant 6 : index
    %c0_43 = arith.constant 0 : index
    %c0_44 = arith.constant 0 : index
    %63 = vector.load %arg1[%c6, %c0_43, %c0_44] : memref<7x128x128xbf16, #tpu.memory_space<vmem>>, vector<1x128x128xbf16>
    %64 = vector.shape_cast %63 : vector<1x128x128xbf16> to vector<128x128xbf16>
    %cst_45 = arith.constant dense<0.000000e+00> : vector<16x128xf32>
    %65 = tpu.matmul %62, %64, %cst_45 {dimension_numbers = #tpu.dot_dimension_numbers<[1], [0], [0], [1], [0, 0, 1, 1], [], []>} : vector<16x128xbf16>, vector<128x128xbf16>, vector<16x128xf32> -> vector<16x128xf32>
    %c6_46 = arith.constant 6 : index
    %c0_47 = arith.constant 0 : index
    %c0_48 = arith.constant 0 : index
    %66 = vector.load %arg2[%c6_46, %c0_47, %c0_48] : memref<7x1x128xf32, #tpu.memory_space<vmem>>, vector<1x1x128xf32>
    %67 = vector.shape_cast %66 : vector<1x1x128xf32> to vector<1x128xf32>
    %68 = vector.broadcast %67 : vector<1x128xf32> to vector<16x128xf32>
    %69 = arith.addf %65, %68 : vector<16x128xf32>
    %70 = arith.addf %69, %41 : vector<16x128xf32>
    %cst_49 = arith.constant 0.000000e+00 : f32
    %71 = vector.broadcast %cst_49 : f32 to vector<16x128xf32>
    %72 = arith.maximumf %70, %71 : vector<16x128xf32>
    %73 = arith.truncf %72 : vector<16x128xf32> to vector<16x128xbf16>
    %c0_50 = arith.constant 0 : index
    %c0_51 = arith.constant 0 : index
    %74 = vector.load %arg3[%c0_50, %c0_51] : memref<128x256xbf16, #tpu.memory_space<vmem>>, vector<128x256xbf16>
    %cst_52 = arith.constant dense<0.000000e+00> : vector<16x256xf32>
    %75 = tpu.matmul %73, %74, %cst_52 {dimension_numbers = #tpu.dot_dimension_numbers<[1], [0], [0], [1], [0, 0, 1, 1], [], []>} : vector<16x128xbf16>, vector<128x256xbf16>, vector<16x256xf32> -> vector<16x256xf32>
    %c0_53 = arith.constant 0 : index
    %c0_54 = arith.constant 0 : index
    %76 = vector.load %arg4[%c0_53, %c0_54] : memref<1x256xf32, #tpu.memory_space<vmem>>, vector<1x256xf32>
    %77 = vector.broadcast %76 : vector<1x256xf32> to vector<16x256xf32>
    %78 = arith.addf %75, %77 : vector<16x256xf32>
    %c0_55 = arith.constant 0 : index
    %c0_56 = arith.constant 0 : index
    %79 = vector.load %arg5[%c0_55, %c0_56] : memref<16x256xf32, #tpu.memory_space<vmem>>, vector<16x256xf32>
    tpu.vector_store %arg5[%c0_55, %c0_56], %78 {strides = array<i32>} : memref<16x256xf32, #tpu.memory_space<vmem>>, vector<16x256xf32>,
    return
  }
}

module attributes {stable_mosaic.version = 11 : i64} {
  func.func @kernel(%arg0: memref<16x128xf32, #tpu.memory_space<vmem>>, %arg1: memref<7x128x128xbf16, #tpu.memory_space<vmem>>, %arg2: memref<7x1x128xf32, #tpu.memory_space<vmem>>, %arg3: memref<128x256xbf16, #tpu.memory_space<vmem>>, %arg4: memref<1x256xf32, #tpu.memory_space<vmem>>, %arg5: memref<16x256xf32, #tpu.memory_space<vmem>>) attributes {dimension_semantics = [], scalar_prefetch = 0 : i64, scratch_operands = 0 : i64, tpu.core_type = #tpu.core_type<tc>} {
    %c0 = arith.constant 0 : index
    %c0_0 = arith.constant 0 : index
    %0 = vector.load %arg0[%c0, %c0_0] : memref<16x128xf32, #tpu.memory_space<vmem>>, vector<16x128xf32>
    %1 = arith.truncf %0 : vector<16x128xf32> to vector<16x128xbf16>
    %c0_1 = arith.constant 0 : index
    %c0_2 = arith.constant 0 : index
    %c0_3 = arith.constant 0 : index
    %2 = vector.load %arg1[%c0_1, %c0_2, %c0_3] : memref<7x128x128xbf16, #tpu.memory_space<vmem>>, vector<1x128x128xbf16>
    %3 = vector.shape_cast %2 : vector<1x128x128xbf16> to vector<128x128xbf16>
    %cst = arith.constant dense<0.000000e+00> : vector<16x128xf32>
    %4 = tpu.matmul %1, %3, %cst {dimension_numbers = #tpu.dot_dimension_numbers<[1], [0], [0], [1], [0, 0, 1, 1], [], []>} : vector<16x128xbf16>, vector<128x128xbf16>, vector<16x128xf32> -> vector<16x128xf32>
    %c0_4 = arith.constant 0 : index
    %c0_5 = arith.constant 0 : index
    %c0_6 = arith.constant 0 : index
    %5 = vector.load %arg2[%c0_4, %c0_5, %c0_6] : memref<7x1x128xf32, #tpu.memory_space<vmem>>, vector<1x1x128xf32>
    %6 = vector.shape_cast %5 : vector<1x1x128xf32> to vector<1x128xf32>
    %7 = vector.broadcast %6 : vector<1x128xf32> to vector<16x128xf32>
    %8 = arith.addf %4, %7 : vector<16x128xf32>
    %cst_7 = arith.constant 0.000000e+00 : f32
    %9 = vector.broadcast %cst_7 : f32 to vector<16x128xf32>
    %10 = arith.maximumf %8, %9 : vector<16x128xf32>
    %11 = arith.truncf %10 : vector<16x128xf32> to vector<16x128xbf16>
    %c1 = arith.constant 1 : index
    %c0_8 = arith.constant 0 : index
    %c0_9 = arith.constant 0 : index
    %12 = vector.load %arg1[%c1, %c0_8, %c0_9] : memref<7x128x128xbf16, #tpu.memory_space<vmem>>, vector<1x128x128xbf16>
    %13 = vector.shape_cast %12 : vector<1x128x128xbf16> to vector<128x128xbf16>
    %cst_10 = arith.constant dense<0.000000e+00> : vector<16x128xf32>
    %14 = tpu.matmul %11, %13, %cst_10 {dimension_numbers = #tpu.dot_dimension_numbers<[1], [0], [0], [1], [0, 0, 1, 1], [], []>} : vector<16x128xbf16>, vector<128x128xbf16>, vector<16x128xf32> -> vector<16x128xf32>
    %c1_11 = arith.constant 1 : index
    %c0_12 = arith.constant 0 : index
    %c0_13 = arith.constant 0 : index
    %15 = vector.load %arg2[%c1_11, %c0_12, %c0_13] : memref<7x1x128xf32, #tpu.memory_space<vmem>>, vector<1x1x128xf32>
    %16 = vector.shape_cast %15 : vector<1x1x128xf32> to vector<1x128xf32>
    %17 = vector.broadcast %16 : vector<1x128xf32> to vector<16x128xf32>
    %18 = arith.addf %14, %17 : vector<16x128xf32>
    %cst_14 = arith.constant 0.000000e+00 : f32
    %19 = vector.broadcast %cst_14 : f32 to vector<16x128xf32>
    %20 = arith.maximumf %18, %19 : vector<16x128xf32>
    %21 = arith.truncf %20 : vector<16x128xf32> to vector<16x128xbf16>
    %c2 = arith.constant 2 : index
    %c0_15 = arith.constant 0 : index
    %c0_16 = arith.constant 0 : index
    %22 = vector.load %arg1[%c2, %c0_15, %c0_16] : memref<7x128x128xbf16, #tpu.memory_space<vmem>>, vector<1x128x128xbf16>
    %23 = vector.shape_cast %22 : vector<1x128x128xbf16> to vector<128x128xbf16>
    %cst_17 = arith.constant dense<0.000000e+00> : vector<16x128xf32>
    %24 = tpu.matmul %21, %23, %cst_17 {dimension_numbers = #tpu.dot_dimension_numbers<[1], [0], [0], [1], [0, 0, 1, 1], [], []>} : vector<16x128xbf16>, vector<128x128xbf16>, vector<16x128xf32> -> vector<16x128xf32>
    %c2_18 = arith.constant 2 : index
    %c0_19 = arith.constant 0 : index
    %c0_20 = arith.constant 0 : index
    %25 = vector.load %arg2[%c2_18, %c0_19, %c0_20] : memref<7x1x128xf32, #tpu.memory_space<vmem>>, vector<1x1x128xf32>
    %26 = vector.shape_cast %25 : vector<1x1x128xf32> to vector<1x128xf32>
    %27 = vector.broadcast %26 : vector<1x128xf32> to vector<16x128xf32>
    %28 = arith.addf %24, %27 : vector<16x128xf32>
    %cst_21 = arith.constant 0.000000e+00 : f32
    %29 = vector.broadcast %cst_21 : f32 to vector<16x128xf32>
    %30 = arith.maximumf %28, %29 : vector<16x128xf32>
    %31 = arith.truncf %30 : vector<16x128xf32> to vector<16x128xbf16>
    %c3 = arith.constant 3 : index
    %c0_22 = arith.constant 0 : index
    %c0_23 = arith.constant 0 : index
    %32 = vector.load %arg1[%c3, %c0_22, %c0_23] : memref<7x128x128xbf16, #tpu.memory_space<vmem>>, vector<1x128x128xbf16>
    %33 = vector.shape_cast %32 : vector<1x128x128xbf16> to vector<128x128xbf16>
    %cst_24 = arith.constant dense<0.000000e+00> : vector<16x128xf32>
    %34 = tpu.matmul %31, %33, %cst_24 {dimension_numbers = #tpu.dot_dimension_numbers<[1], [0], [0], [1], [0, 0, 1, 1], [], []>} : vector<16x128xbf16>, vector<128x128xbf16>, vector<16x128xf32> -> vector<16x128xf32>
    %c3_25 = arith.constant 3 : index
    %c0_26 = arith.constant 0 : index
    %c0_27 = arith.constant 0 : index
    %35 = vector.load %arg2[%c3_25, %c0_26, %c0_27] : memref<7x1x128xf32, #tpu.memory_space<vmem>>, vector<1x1x128xf32>
    %36 = vector.shape_cast %35 : vector<1x1x128xf32> to vector<1x128xf32>
    %37 = vector.broadcast %36 : vector<1x128xf32> to vector<16x128xf32>
    %38 = arith.addf %34, %37 : vector<16x128xf32>
    %39 = arith.addf %38, %10 : vector<16x128xf32>
    %cst_28 = arith.constant 0.000000e+00 : f32
    %40 = vector.broadcast %cst_28 : f32 to vector<16x128xf32>
    %41 = arith.maximumf %39, %40 : vector<16x128xf32>
    %42 = arith.truncf %41 : vector<16x128xf32> to vector<16x128xbf16>
    %c4 = arith.constant 4 : index
    %c0_29 = arith.constant 0 : index
    %c0_30 = arith.constant 0 : index
    %43 = vector.load %arg1[%c4, %c0_29, %c0_30] : memref<7x128x128xbf16, #tpu.memory_space<vmem>>, vector<1x128x128xbf16>
    %44 = vector.shape_cast %43 : vector<1x128x128xbf16> to vector<128x128xbf16>
    %cst_31 = arith.constant dense<0.000000e+00> : vector<16x128xf32>
    %45 = tpu.matmul %42, %44, %cst_31 {dimension_numbers = #tpu.dot_dimension_numbers<[1], [0], [0], [1], [0, 0, 1, 1], [], []>} : vector<16x128xbf16>, vector<128x128xbf16>, vector<16x128xf32> -> vector<16x128xf32>
    %c4_32 = arith.constant 4 : index
    %c0_33 = arith.constant 0 : index
    %c0_34 = arith.constant 0 : index
    %46 = vector.load %arg2[%c4_32, %c0_33, %c0_34] : memref<7x1x128xf32, #tpu.memory_space<vmem>>, vector<1x1x128xf32>
    %47 = vector.shape_cast %46 : vector<1x1x128xf32> to vector<1x128xf32>
    %48 = vector.broadcast %47 : vector<1x128xf32> to vector<16x128xf32>
    %49 = arith.addf %45, %48 : vector<16x128xf32>
    %cst_35 = arith.constant 0.000000e+00 : f32
    %50 = vector.broadcast %cst_35 : f32 to vector<16x128xf32>
    %51 = arith.maximumf %49, %50 : vector<16x128xf32>
    %52 = arith.truncf %51 : vector<16x128xf32> to vector<16x128xbf16>
    %c5 = arith.constant 5 : index
    %c0_36 = arith.constant 0 : index
    %c0_37 = arith.constant 0 : index
    %53 = vector.load %arg1[%c5, %c0_36, %c0_37] : memref<7x128x128xbf16, #tpu.memory_space<vmem>>, vector<1x128x128xbf16>
    %54 = vector.shape_cast %53 : vector<1x128x128xbf16> to vector<128x128xbf16>
    %cst_38 = arith.constant dense<0.000000e+00> : vector<16x128xf32>
    %55 = tpu.matmul %52, %54, %cst_38 {dimension_numbers = #tpu.dot_dimension_numbers<[1], [0], [0], [1], [0, 0, 1, 1], [], []>} : vector<16x128xbf16>, vector<128x128xbf16>, vector<16x128xf32> -> vector<16x128xf32>
    %c5_39 = arith.constant 5 : index
    %c0_40 = arith.constant 0 : index
    %c0_41 = arith.constant 0 : index
    %56 = vector.load %arg2[%c5_39, %c0_40, %c0_41] : memref<7x1x128xf32, #tpu.memory_space<vmem>>, vector<1x1x128xf32>
    %57 = vector.shape_cast %56 : vector<1x1x128xf32> to vector<1x128xf32>
    %58 = vector.broadcast %57 : vector<1x128xf32> to vector<16x128xf32>
    %59 = arith.addf %55, %58 : vector<16x128xf32>
    %cst_42 = arith.constant 0.000000e+00 : f32
    %60 = vector.broadcast %cst_42 : f32 to vector<16x128xf32>
    %61 = arith.maximumf %59, %60 : vector<16x128xf32>
    %62 = arith.truncf %61 : vector<16x128xf32> to vector<16x128xbf16>
    %c6 = arith.constant 6 : index
    %c0_43 = arith.constant 0 : index
    %c0_44 = arith.constant 0 : index
    %63 = vector.load %arg1[%c6, %c0_43, %c0_44] : memref<7x128x128xbf16, #tpu.memory_space<vmem>>, vector<1x128x128xbf16>
    %64 = vector.shape_cast %63 : vector<1x128x128xbf16> to vector<128x128xbf16>
    %cst_45 = arith.constant dense<0.000000e+00> : vector<16x128xf32>
    %65 = tpu.matmul %62, %64, %cst_45 {dimension_numbers = #tpu.dot_dimension_numbers<[1], [0], [0], [1], [0, 0, 1, 1], [], []>} : vector<16x128xbf16>, vector<128x128xbf16>, vector<16x128xf32> -> vector<16x128xf32>
    %c6_46 = arith.constant 6 : index
    %c0_47 = arith.constant 0 : index
    %c0_48 = arith.constant 0 : index
    %66 = vector.load %arg2[%c6_46, %c0_47, %c0_48] : memref<7x1x128xf32, #tpu.memory_space<vmem>>, vector<1x1x128xf32>
    %67 = vector.shape_cast %66 : vector<1x1x128xf32> to vector<1x128xf32>
    %68 = vector.broadcast %67 : vector<1x128xf32> to vector<16x128xf32>
    %69 = arith.addf %65, %68 : vector<16x128xf32>
    %70 = arith.addf %69, %41 : vector<16x128xf32>
    %cst_49 = arith.constant 0.000000e+00 : f32
    %71 = vector.broadcast %cst_49 : f32 to vector<16x128xf32>
    %72 = arith.maximumf %70, %71 : vector<16x128xf32>
    %73 = arith.truncf %72 : vector<16x128xf32> to vector<16x128xbf16>
    %c0_50 = arith.constant 0 : index
    %c0_51 = arith.constant 0 : index
    %74 = vector.load %arg3[%c0_50, %c0_51] : memref<128x256xbf16, #tpu.memory_space<vmem>>, vector<128x256xbf16>
    %cst_52 = arith.constant dense<0.000000e+00> : vector<16x256xf32>
    %75 = tpu.matmul %73, %74, %cst_52 {dimension_numbers = #tpu.dot_dimension_numbers<[1], [0], [0], [1], [0, 0, 1, 1], [], []>} : vector<16x128xbf16>, vector<128x256xbf16>, vector<16x256xf32> -> vector<16x256xf32>
    %c0_53 = arith.constant 0 : index
    %c0_54 = arith.constant 0 : index
    %76 = vector.load %arg4[%c0_53, %c0_54] : memref<1x256xf32, #tpu.memory_space<vmem>>, vector<1x256xf32>
    %77 = vector.broadcast %76 : vector<1x256xf32> to vector<16x256xf32>
    %78 = arith.addf %75, %77 : vector<16x256xf32>
    %c0_55 = arith.constant 0 : index
    %c0_56 = arith.constant 0 : index
    %79 = vector.load %arg5[%c0_55, %c0_56] : memref<16x256xf32, #tpu.memory_space<vmem>>, vector<16x256xf32>
    tpu.vector_store %arg5[%c0_55, %c0_56], %78 {strides = array<i32>} : memref<16x256xf32, #tpu.memory_space<vmem>>, vector<16x256xf32>,
    return
  }
}

</mosaic_0001>

<llo_original>
// kernel: _forward.3
$region0: #{_forward.3}
  #allocation0 [shape = 'u32[]', space=smem, size = 0x4, offset = 0x4, fixed_abs, tag = 'smem constant byte address 0x4 - core index']
  #allocation1 [shape = 'u32[72,128]{1,0:T(1,128)}', space=vmem, size = 0x9000, scoped, tag = 'internal scratch']
  %s0 = inlined_call_operand.vmem [shape: f32[16,128], index: 0, kind: input, shape index: {}]
  %s1 = inlined_call_operand.vmem [shape: bf16[7,128,128], index: 1, kind: input, shape index: {}]
  %s2 = inlined_call_operand.vmem [shape: f32[7,1,128], index: 2, kind: input, shape index: {}]
  %s3 = inlined_call_operand.vmem [shape: bf16[128,256], index: 3, kind: input, shape index: {}]
  %s4 = inlined_call_operand.vmem [shape: f32[1,256], index: 4, kind: input, shape index: {}]
  %s5 = inlined_call_operand.vmem [shape: f32[16,256], index: 5, kind: output, shape index: {}]
  %s6 = sld [smem:[#allocation0]]
  $region30: #{_forward.3} parent=0
    _
  %s8 = ssub.s32 1, %s6
  %s9 = scalar_select 0, %s8, %s6
  // Predicated region
  $region2: #{_forward.3} parent=0 // pred_check
    _
  $region3: #{_forward.3} parent=0 // pred_check_branch
    %11 = sbr.rel (0) target = $region5
  $region4: #{_forward.3} parent=0 // pred_region
    _
  $region5: #{_forward.3} parent=0 // pred_fallthru
    _
  // Predicated region
  $region6: #{_forward.3} parent=0 // pred_check
    _
  $region7: #{_forward.3} parent=0 // pred_check_branch
    %13 = sbr.rel (0) target = $region9
  $region8: #{_forward.3} parent=0 // pred_region
    _
  $region9: #{_forward.3} parent=0 // pred_fallthru
    _
  // Predicated region
  $region10: #{_forward.3} parent=0 // pred_check
    _
  $region11: #{_forward.3} parent=0 // pred_check_branch
    %15 = sbr.rel (0) target = $region13
  $region12: #{_forward.3} parent=0 // pred_region
    _
  $region13: #{_forward.3} parent=0 // pred_fallthru
    _
  // Predicated region
  $region14: #{_forward.3} parent=0 // pred_check
    _
  $region15: #{_forward.3} parent=0 // pred_check_branch
    %17 = sbr.rel (0) target = $region17
  $region16: #{_forward.3} parent=0 // pred_region
    _
  $region17: #{_forward.3} parent=0 // pred_fallthru
    _
  // Predicated region
  $region18: #{_forward.3} parent=0 // pred_check
    _
  $region19: #{_forward.3} parent=0 // pred_check_branch
    %19 = sbr.rel (0) target = $region21
  $region20: #{_forward.3} parent=0 // pred_region
    _
  $region21: #{_forward.3} parent=0 // pred_fallthru
    _
  %v20 = vld [vmem:[%s0] sm:$0xff]
  %v21 = vld [vmem:[%s0 + $0x8] sm:$0xff]
  %v22 = vpack.c.bf16 %v21, %v20
  %v23 = vld [vmem:[%s1] sm:$0xf]
  %v24 = vld [vmem:[%s1 + $0x4] sm:$0xf]
  %v25 = vld [vmem:[%s1 + $0x8] sm:$0xf]
  %v26 = vld [vmem:[%s1 + $0xc] sm:$0xf]
  %v27 = vld [vmem:[%s1 + $0x10] sm:$0xf]
  %v28 = vld [vmem:[%s1 + $0x14] sm:$0xf]
  %v29 = vld [vmem:[%s1 + $0x18] sm:$0xf]
  %v30 = vld [vmem:[%s1 + $0x1c] sm:$0xf]
  %v31 = vld [vmem:[%s1 + $0x20] sm:$0xf]
  %v32 = vld [vmem:[%s1 + $0x24] sm:$0xf]
  %v33 = vld [vmem:[%s1 + $0x28] sm:$0xf]
  %v34 = vld [vmem:[%s1 + $0x2c] sm:$0xf]
  %v35 = vld [vmem:[%s1 + $0x30] sm:$0xf]
  %v36 = vld [vmem:[%s1 + $0x34] sm:$0xf]
  %v37 = vld [vmem:[%s1 + $0x38] sm:$0xf]
  %v38 = vld [vmem:[%s1 + $0x3c] sm:$0xf]
  %v39 = vld [vmem:[%s2] sm:$0x1]
  %v41 = vperm.slane %v39, 0
  %v59 = vunpack.c.l.b16 %v23
  %v60 = vunpack.c.l.b16 %v24
  %v61 = vunpack.c.l.b16 %v25
  %v62 = vunpack.c.l.b16 %v26
  %v63 = vunpack.c.l.b16 %v27
  %v64 = vunpack.c.l.b16 %v28
  %v65 = vunpack.c.l.b16 %v29
  %v66 = vunpack.c.l.b16 %v30
  %v67 = vunpack.c.l.b16 %v31
  %v68 = vunpack.c.l.b16 %v32
  %v69 = vunpack.c.l.b16 %v33
  %v70 = vunpack.c.l.b16 %v34
  %v71 = vunpack.c.l.b16 %v35
  %v72 = vunpack.c.l.b16 %v36
  %v73 = vunpack.c.l.b16 %v37
  %v74 = vunpack.c.l.b16 %v38
  %v75 = vpack.c.b16 %v60, %v59
  %v76 = vpack.c.b16 %v62, %v61
  %v77 = vpack.c.b16 %v64, %v63
  %v78 = vpack.c.b16 %v66, %v65
  %v79 = vpack.c.b16 %v68, %v67
  %v80 = vpack.c.b16 %v70, %v69
  %v81 = vpack.c.b16 %v72, %v71
  %v82 = vpack.c.b16 %v74, %v73
  %91 = vmatpush.bf16.msra.mxu0 %v82
  %92 = vmatpush.bf16.msra.mxu0 %v81
  %93 = vmatpush.bf16.msra.mxu0 %v80
  %94 = vmatpush.bf16.msra.mxu0 %v79
  %95 = vmatpush.bf16.msra.mxu0 %v78
  %96 = vmatpush.bf16.msra.mxu0 %v77
  %97 = vmatpush.bf16.msra.mxu0 %v76
  %98 = vmatpush.bf16.msra.mxu0 %v75
  %99 = vmatmul.bf16.gmra.mxu0 %v22
  %v100 = vpop.f32.mrf.mxu0
  %v101 = vadd.f32 %v41, %v100
  %v102 = vpop.f32.mrf.mxu0
  %v103 = vadd.f32 %v41, %v102
  %104 = vdwg.mxu0
  %v105 = vmax.f32 %v101, 0.0
  %v106 = vmax.f32 %v103, 0.0
  %v107 = vpack.c.bf16 %v106, %v105
  %s108 = scalar_lea.vmem %s1, 64
  %v109 = vld [vmem:[%s108] sm:$0xf]
  %v110 = vld [vmem:[%s108 + $0x4] sm:$0xf]
  %v111 = vld [vmem:[%s108 + $0x8] sm:$0xf]
  %v112 = vld [vmem:[%s108 + $0xc] sm:$0xf]
  %v113 = vld [vmem:[%s108 + $0x10] sm:$0xf]
  %v114 = vld [vmem:[%s108 + $0x14] sm:$0xf]
  %v115 = vld [vmem:[%s108 + $0x18] sm:$0xf]
  %v116 = vld [vmem:[%s108 + $0x1c] sm:$0xf]
  %v117 = vld [vmem:[%s108 + $0x20] sm:$0xf]
  %v118 = vld [vmem:[%s108 + $0x24] sm:$0xf]
  %v119 = vld [vmem:[%s108 + $0x28] sm:$0xf]
  %v120 = vld [vmem:[%s108 + $0x2c] sm:$0xf]
  %v121 = vld [vmem:[%s108 + $0x30] sm:$0xf]
  %v122 = vld [vmem:[%s108 + $0x34] sm:$0xf]
  %v123 = vld [vmem:[%s108 + $0x38] sm:$0xf]
  %v124 = vld [vmem:[%s108 + $0x3c] sm:$0xf]
  %s125 = scalar_lea.vmem %s2, 1
  %v126 = vld [vmem:[%s125] sm:$0x1]
  %v128 = vperm.slane %v126, 0
  %v146 = vunpack.c.l.b16 %v109
  %v147 = vunpack.c.l.b16 %v110
  %v148 = vunpack.c.l.b16 %v111
  %v149 = vunpack.c.l.b16 %v112
  %v150 = vunpack.c.l.b16 %v113
  %v151 = vunpack.c.l.b16 %v114
  %v152 = vunpack.c.l.b16 %v115
  %v153 = vunpack.c.l.b16 %v116
  %v154 = vunpack.c.l.b16 %v117
  %v155 = vunpack.c.l.b16 %v118
  %v156 = vunpack.c.l.b16 %v119
  %v157 = vunpack.c.l.b16 %v120
  %v158 = vunpack.c.l.b16 %v121
  %v159 = vunpack.c.l.b16 %v122
  %v160 = vunpack.c.l.b16 %v123
  %v161 = vunpack.c.l.b16 %v124
  %v162 = vpack.c.b16 %v147, %v146
  %v163 = vpack.c.b16 %v149, %v148
  %v164 = vpack.c.b16 %v151, %v150
  %v165 = vpack.c.b16 %v153, %v152
  %v166 = vpack.c.b16 %v155, %v154
  %v167 = vpack.c.b16 %v157, %v156
  %v168 = vpack.c.b16 %v159, %v158
  %v169 = vpack.c.b16 %v161, %v160
  %178 = vmatpush.bf16.msra.mxu0 %v169
  %179 = vmatpush.bf16.msra.mxu0 %v168
  %180 = vmatpush.bf16.msra.mxu0 %v167
  %181 = vmatpush.bf16.msra.mxu0 %v166
  %182 = vmatpush.bf16.msra.mxu0 %v165
  %183 = vmatpush.bf16.msra.mxu0 %v164
  %184 = vmatpush.bf16.msra.mxu0 %v163
  %185 = vmatpush.bf16.msra.mxu0 %v162
  %186 = vmatmul.bf16.gmra.mxu0 %v107
  %v187 = vpop.f32.mrf.mxu0
  %v188 = vadd.f32 %v128, %v187
  %v189 = vpop.f32.mrf.mxu0
  %v190 = vadd.f32 %v128, %v189
  %191 = vdwg.mxu0
  %v192 = vmax.f32 %v188, 0.0
  %v193 = vmax.f32 %v190, 0.0
  %v194 = vpack.c.bf16 %v193, %v192
  %s195 = scalar_lea.vmem %s1, 128
  %v196 = vld [vmem:[%s195] sm:$0xf]
  %v197 = vld [vmem:[%s195 + $0x4] sm:$0xf]
  %v198 = vld [vmem:[%s195 + $0x8] sm:$0xf]
  %v199 = vld [vmem:[%s195 + $0xc] sm:$0xf]
  %v200 = vld [vmem:[%s195 + $0x10] sm:$0xf]
  %v201 = vld [vmem:[%s195 + $0x14] sm:$0xf]
  %v202 = vld [vmem:[%s195 + $0x18] sm:$0xf]
  %v203 = vld [vmem:[%s195 + $0x1c] sm:$0xf]
  %v204 = vld [vmem:[%s195 + $0x20] sm:$0xf]
  %v205 = vld [vmem:[%s195 + $0x24] sm:$0xf]
  %v206 = vld [vmem:[%s195 + $0x28] sm:$0xf]
  %v207 = vld [vmem:[%s195 + $0x2c] sm:$0xf]
  %v208 = vld [vmem:[%s195 + $0x30] sm:$0xf]
  %v209 = vld [vmem:[%s195 + $0x34] sm:$0xf]
  %v210 = vld [vmem:[%s195 + $0x38] sm:$0xf]
  %v211 = vld [vmem:[%s195 + $0x3c] sm:$0xf]
  %s212 = scalar_lea.vmem %s2, 2
  %v213 = vld [vmem:[%s212] sm:$0x1]
  %v215 = vperm.slane %v213, 0
  %v233 = vunpack.c.l.b16 %v196
  %v234 = vunpack.c.l.b16 %v197
  %v235 = vunpack.c.l.b16 %v198
  %v236 = vunpack.c.l.b16 %v199
  %v237 = vunpack.c.l.b16 %v200
  %v238 = vunpack.c.l.b16 %v201
  %v239 = vunpack.c.l.b16 %v202
  %v240 = vunpack.c.l.b16 %v203
  %v241 = vunpack.c.l.b16 %v204
  %v242 = vunpack.c.l.b16 %v205
  %v243 = vunpack.c.l.b16 %v206
  %v244 = vunpack.c.l.b16 %v207
  %v245 = vunpack.c.l.b16 %v208
  %v246 = vunpack.c.l.b16 %v209
  %v247 = vunpack.c.l.b16 %v210
  %v248 = vunpack.c.l.b16 %v211
  %v249 = vpack.c.b16 %v234, %v233
  %v250 = vpack.c.b16 %v236, %v235
  %v251 = vpack.c.b16 %v238, %v237
  %v252 = vpack.c.b16 %v240, %v239
  %v253 = vpack.c.b16 %v242, %v241
  %v254 = vpack.c.b16 %v244, %v243
  %v255 = vpack.c.b16 %v246, %v245
  %v256 = vpack.c.b16 %v248, %v247
  %265 = vmatpush.bf16.msra.mxu0 %v256
  %266 = vmatpush.bf16.msra.mxu0 %v255
  %267 = vmatpush.bf16.msra.mxu0 %v254
  %268 = vmatpush.bf16.msra.mxu0 %v253
  %269 = vmatpush.bf16.msra.mxu0 %v252
  %270 = vmatpush.bf16.msra.mxu0 %v251
  %271 = vmatpush.bf16.msra.mxu0 %v250
  %272 = vmatpush.bf16.msra.mxu0 %v249
  %273 = vmatmul.bf16.gmra.mxu0 %v194
  %v274 = vpop.f32.mrf.mxu0
  %v275 = vadd.f32 %v215, %v274
  %v276 = vpop.f32.mrf.mxu0
  %v277 = vadd.f32 %v215, %v276
  %278 = vdwg.mxu0
  %v279 = vmax.f32 %v275, 0.0
  %v280 = vmax.f32 %v277, 0.0
  %v281 = vpack.c.bf16 %v280, %v279
  %s282 = scalar_lea.vmem %s1, 192
  %v283 = vld [vmem:[%s282] sm:$0xf]
  %v284 = vld [vmem:[%s282 + $0x4] sm:$0xf]
  %v285 = vld [vmem:[%s282 + $0x8] sm:$0xf]
  %v286 = vld [vmem:[%s282 + $0xc] sm:$0xf]
  %v287 = vld [vmem:[%s282 + $0x10] sm:$0xf]
  %v288 = vld [vmem:[%s282 + $0x14] sm:$0xf]
  %v289 = vld [vmem:[%s282 + $0x18] sm:$0xf]
  %v290 = vld [vmem:[%s282 + $0x1c] sm:$0xf]
  %v291 = vld [vmem:[%s282 + $0x20] sm:$0xf]
  %v292 = vld [vmem:[%s282 + $0x24] sm:$0xf]
  %v293 = vld [vmem:[%s282 + $0x28] sm:$0xf]
  %v294 = vld [vmem:[%s282 + $0x2c] sm:$0xf]
  %v295 = vld [vmem:[%s282 + $0x30] sm:$0xf]
  %v296 = vld [vmem:[%s282 + $0x34] sm:$0xf]
  %v297 = vld [vmem:[%s282 + $0x38] sm:$0xf]
  %v298 = vld [vmem:[%s282 + $0x3c] sm:$0xf]
  %s299 = scalar_lea.vmem %s2, 3
  %v300 = vld [vmem:[%s299] sm:$0x1]
  %v302 = vperm.slane %v300, 0
  %v320 = vunpack.c.l.b16 %v283
  %v321 = vunpack.c.l.b16 %v284
  %v322 = vunpack.c.l.b16 %v285
  %v323 = vunpack.c.l.b16 %v286
  %v324 = vunpack.c.l.b16 %v287
  %v325 = vunpack.c.l.b16 %v288
  %v326 = vunpack.c.l.b16 %v289
  %v327 = vunpack.c.l.b16 %v290
  %v328 = vunpack.c.l.b16 %v291
  %v329 = vunpack.c.l.b16 %v292
  %v330 = vunpack.c.l.b16 %v293
  %v331 = vunpack.c.l.b16 %v294
  %v332 = vunpack.c.l.b16 %v295
  %v333 = vunpack.c.l.b16 %v296
  %v334 = vunpack.c.l.b16 %v297
  %v335 = vunpack.c.l.b16 %v298
  %v336 = vpack.c.b16 %v321, %v320
  %v337 = vpack.c.b16 %v323, %v322
  %v338 = vpack.c.b16 %v325, %v324
  %v339 = vpack.c.b16 %v327, %v326
  %v340 = vpack.c.b16 %v329, %v328
  %v341 = vpack.c.b16 %v331, %v330
  %v342 = vpack.c.b16 %v333, %v332
  %v343 = vpack.c.b16 %v335, %v334
  %352 = vmatpush.bf16.msra.mxu0 %v343
  %353 = vmatpush.bf16.msra.mxu0 %v342
  %354 = vmatpush.bf16.msra.mxu0 %v341
  %355 = vmatpush.bf16.msra.mxu0 %v340
  %356 = vmatpush.bf16.msra.mxu0 %v339
  %357 = vmatpush.bf16.msra.mxu0 %v338
  %358 = vmatpush.bf16.msra.mxu0 %v337
  %359 = vmatpush.bf16.msra.mxu0 %v336
  %360 = vmatmul.bf16.gmra.mxu0 %v281
  %v361 = vpop.f32.mrf.mxu0
  %v362 = vadd.f32 %v302, %v361
  %v363 = vpop.f32.mrf.mxu0
  %v364 = vadd.f32 %v302, %v363
  %365 = vdwg.mxu0
  %v366 = vadd.f32 %v362, %v105
  %v367 = vadd.f32 %v364, %v106
  %v368 = vmax.f32 %v366, 0.0
  %v369 = vmax.f32 %v367, 0.0
  %v370 = vpack.c.bf16 %v369, %v368
  %s371 = scalar_lea.vmem %s1, 256
  %v372 = vld [vmem:[%s371] sm:$0xf]
  %v373 = vld [vmem:[%s371 + $0x4] sm:$0xf]
  %v374 = vld [vmem:[%s371 + $0x8] sm:$0xf]
  %v375 = vld [vmem:[%s371 + $0xc] sm:$0xf]
  %v376 = vld [vmem:[%s371 + $0x10] sm:$0xf]
  %v377 = vld [vmem:[%s371 + $0x14] sm:$0xf]
  %v378 = vld [vmem:[%s371 + $0x18] sm:$0xf]
  %v379 = vld [vmem:[%s371 + $0x1c] sm:$0xf]
  %v380 = vld [vmem:[%s371 + $0x20] sm:$0xf]
  %v381 = vld [vmem:[%s371 + $0x24] sm:$0xf]
  %v382 = vld [vmem:[%s371 + $0x28] sm:$0xf]
  %v383 = vld [vmem:[%s371 + $0x2c] sm:$0xf]
  %v384 = vld [vmem:[%s371 + $0x30] sm:$0xf]
  %v385 = vld [vmem:[%s371 + $0x34] sm:$0xf]
  %v386 = vld [vmem:[%s371 + $0x38] sm:$0xf]
  %v387 = vld [vmem:[%s371 + $0x3c] sm:$0xf]
  %s388 = scalar_lea.vmem %s2, 4
  %v389 = vld [vmem:[%s388] sm:$0x1]
  %v391 = vperm.slane %v389, 0
  %v409 = vunpack.c.l.b16 %v372
  %v410 = vunpack.c.l.b16 %v373
  %v411 = vunpack.c.l.b16 %v374
  %v412 = vunpack.c.l.b16 %v375
  %v413 = vunpack.c.l.b16 %v376
  %v414 = vunpack.c.l.b16 %v377
  %v415 = vunpack.c.l.b16 %v378
  %v416 = vunpack.c.l.b16 %v379
  %v417 = vunpack.c.l.b16 %v380
  %v418 = vunpack.c.l.b16 %v381
  %v419 = vunpack.c.l.b16 %v382
  %v420 = vunpack.c.l.b16 %v383
  %v421 = vunpack.c.l.b16 %v384
  %v422 = vunpack.c.l.b16 %v385
  %v423 = vunpack.c.l.b16 %v386
  %v424 = vunpack.c.l.b16 %v387
  %v425 = vpack.c.b16 %v410, %v409
  %v426 = vpack.c.b16 %v412, %v411
  %v427 = vpack.c.b16 %v414, %v413
  %v428 = vpack.c.b16 %v416, %v415
  %v429 = vpack.c.b16 %v418, %v417
  %v430 = vpack.c.b16 %v420, %v419
  %v431 = vpack.c.b16 %v422, %v421
  %v432 = vpack.c.b16 %v424, %v423
  %441 = vmatpush.bf16.msra.mxu0 %v432
  %442 = vmatpush.bf16.msra.mxu0 %v431
  %443 = vmatpush.bf16.msra.mxu0 %v430
  %444 = vmatpush.bf16.msra.mxu0 %v429
  %445 = vmatpush.bf16.msra.mxu0 %v428
  %446 = vmatpush.bf16.msra.mxu0 %v427
  %447 = vmatpush.bf16.msra.mxu0 %v426
  %448 = vmatpush.bf16.msra.mxu0 %v425
  %449 = vmatmul.bf16.gmra.mxu0 %v370
  %v450 = vpop.f32.mrf.mxu0
  %v451 = vadd.f32 %v391, %v450
  %v452 = vpop.f32.mrf.mxu0
  %v453 = vadd.f32 %v391, %v452
  %454 = vdwg.mxu0
  %v455 = vmax.f32 %v451, 0.0
  %v456 = vmax.f32 %v453, 0.0
  %v457 = vpack.c.bf16 %v456, %v455
  %s458 = scalar_lea.vmem %s1, 320
  %v459 = vld [vmem:[%s458] sm:$0xf]
  %v460 = vld [vmem:[%s458 + $0x4] sm:$0xf]
  %v461 = vld [vmem:[%s458 + $0x8] sm:$0xf]
  %v462 = vld [vmem:[%s458 + $0xc] sm:$0xf]
  %v463 = vld [vmem:[%s458 + $0x10] sm:$0xf]
  %v464 = vld [vmem:[%s458 + $0x14] sm:$0xf]
  %v465 = vld [vmem:[%s458 + $0x18] sm:$0xf]
  %v466 = vld [vmem:[%s458 + $0x1c] sm:$0xf]
  %v467 = vld [vmem:[%s458 + $0x20] sm:$0xf]
  %v468 = vld [vmem:[%s458 + $0x24] sm:$0xf]
  %v469 = vld [vmem:[%s458 + $0x28] sm:$0xf]
  %v470 = vld [vmem:[%s458 + $0x2c] sm:$0xf]
  %v471 = vld [vmem:[%s458 + $0x30] sm:$0xf]
  %v472 = vld [vmem:[%s458 + $0x34] sm:$0xf]
  %v473 = vld [vmem:[%s458 + $0x38] sm:$0xf]
  %v474 = vld [vmem:[%s458 + $0x3c] sm:$0xf]
  %s475 = scalar_lea.vmem %s2, 5
  %v476 = vld [vmem:[%s475] sm:$0x1]
  %v478 = vperm.slane %v476, 0
  %v496 = vunpack.c.l.b16 %v459
  %v497 = vunpack.c.l.b16 %v460
  %v498 = vunpack.c.l.b16 %v461
  %v499 = vunpack.c.l.b16 %v462
  %v500 = vunpack.c.l.b16 %v463
  %v501 = vunpack.c.l.b16 %v464
  %v502 = vunpack.c.l.b16 %v465
  %v503 = vunpack.c.l.b16 %v466
  %v504 = vunpack.c.l.b16 %v467
  %v505 = vunpack.c.l.b16 %v468
  %v506 = vunpack.c.l.b16 %v469
  %v507 = vunpack.c.l.b16 %v470
  %v508 = vunpack.c.l.b16 %v471
  %v509 = vunpack.c.l.b16 %v472
  %v510 = vunpack.c.l.b16 %v473
  %v511 = vunpack.c.l.b16 %v474
  %v512 = vpack.c.b16 %v497, %v496
  %v513 = vpack.c.b16 %v499, %v498
  %v514 = vpack.c.b16 %v501, %v500
  %v515 = vpack.c.b16 %v503, %v502
  %v516 = vpack.c.b16 %v505, %v504
  %v517 = vpack.c.b16 %v507, %v506
  %v518 = vpack.c.b16 %v509, %v508
  %v519 = vpack.c.b16 %v511, %v510
  %528 = vmatpush.bf16.msra.mxu0 %v519
  %529 = vmatpush.bf16.msra.mxu0 %v518
  %530 = vmatpush.bf16.msra.mxu0 %v517
  %531 = vmatpush.bf16.msra.mxu0 %v516
  %532 = vmatpush.bf16.msra.mxu0 %v515
  %533 = vmatpush.bf16.msra.mxu0 %v514
  %534 = vmatpush.bf16.msra.mxu0 %v513
  %535 = vmatpush.bf16.msra.mxu0 %v512
  %536 = vmatmul.bf16.gmra.mxu0 %v457
  %v537 = vpop.f32.mrf.mxu0
  %v538 = vadd.f32 %v478, %v537
  %v539 = vpop.f32.mrf.mxu0
  %v540 = vadd.f32 %v478, %v539
  %541 = vdwg.mxu0
  %v542 = vmax.f32 %v538, 0.0
  %v543 = vmax.f32 %v540, 0.0
  %v544 = vpack.c.bf16 %v543, %v542
  %s545 = scalar_lea.vmem %s1, 384
  %v546 = vld [vmem:[%s545] sm:$0xf]
  %v547 = vld [vmem:[%s545 + $0x4] sm:$0xf]
  %v548 = vld [vmem:[%s545 + $0x8] sm:$0xf]
  %v549 = vld [vmem:[%s545 + $0xc] sm:$0xf]
  %v550 = vld [vmem:[%s545 + $0x10] sm:$0xf]
  %v551 = vld [vmem:[%s545 + $0x14] sm:$0xf]
  %v552 = vld [vmem:[%s545 + $0x18] sm:$0xf]
  %v553 = vld [vmem:[%s545 + $0x1c] sm:$0xf]
  %v554 = vld [vmem:[%s545 + $0x20] sm:$0xf]
  %v555 = vld [vmem:[%s545 + $0x24] sm:$0xf]
  %v556 = vld [vmem:[%s545 + $0x28] sm:$0xf]
  %v557 = vld [vmem:[%s545 + $0x2c] sm:$0xf]
  %v558 = vld [vmem:[%s545 + $0x30] sm:$0xf]
  %v559 = vld [vmem:[%s545 + $0x34] sm:$0xf]
  %v560 = vld [vmem:[%s545 + $0x38] sm:$0xf]
  %v561 = vld [vmem:[%s545 + $0x3c] sm:$0xf]
  %s562 = scalar_lea.vmem %s2, 6
  %v563 = vld [vmem:[%s562] sm:$0x1]
  %v565 = vperm.slane %v563, 0
  %v583 = vunpack.c.l.b16 %v546
  %v584 = vunpack.c.l.b16 %v547
  %v585 = vunpack.c.l.b16 %v548
  %v586 = vunpack.c.l.b16 %v549
  %v587 = vunpack.c.l.b16 %v550
  %v588 = vunpack.c.l.b16 %v551
  %v589 = vunpack.c.l.b16 %v552
  %v590 = vunpack.c.l.b16 %v553
  %v591 = vunpack.c.l.b16 %v554
  %v592 = vunpack.c.l.b16 %v555
  %v593 = vunpack.c.l.b16 %v556
  %v594 = vunpack.c.l.b16 %v557
  %v595 = vunpack.c.l.b16 %v558
  %v596 = vunpack.c.l.b16 %v559
  %v597 = vunpack.c.l.b16 %v560
  %v598 = vunpack.c.l.b16 %v561
  %v599 = vpack.c.b16 %v584, %v583
  %v600 = vpack.c.b16 %v586, %v585
  %v601 = vpack.c.b16 %v588, %v587
  %v602 = vpack.c.b16 %v590, %v589
  %v603 = vpack.c.b16 %v592, %v591
  %v604 = vpack.c.b16 %v594, %v593
  %v605 = vpack.c.b16 %v596, %v595
  %v606 = vpack.c.b16 %v598, %v597
  %615 = vmatpush.bf16.msra.mxu0 %v606
  %616 = vmatpush.bf16.msra.mxu0 %v605
  %617 = vmatpush.bf16.msra.mxu0 %v604
  %618 = vmatpush.bf16.msra.mxu0 %v603
  %619 = vmatpush.bf16.msra.mxu0 %v602
  %620 = vmatpush.bf16.msra.mxu0 %v601
  %621 = vmatpush.bf16.msra.mxu0 %v600
  %622 = vmatpush.bf16.msra.mxu0 %v599
  %623 = vmatmul.bf16.gmra.mxu0 %v544
  %v624 = vpop.f32.mrf.mxu0
  %v625 = vadd.f32 %v565, %v624
  %v626 = vpop.f32.mrf.mxu0
  %v627 = vadd.f32 %v565, %v626
  %628 = vdwg.mxu0
  %v629 = vadd.f32 %v625, %v368
  %v630 = vadd.f32 %v627, %v369
  %v631 = vmax.f32 %v629, 0.0
  %v632 = vmax.f32 %v630, 0.0
  %v633 = vpack.c.bf16 %v632, %v631
  %v634 = vld [vmem:[%s3] sm:$0xff]
  %v635 = vld [vmem:[%s3 + $0x8] sm:$0xff]
  %v636 = vld [vmem:[%s3 + $0x10] sm:$0xff]
  %v637 = vld [vmem:[%s3 + $0x18] sm:$0xff]
  %v638 = vld [vmem:[%s3 + $0x20] sm:$0xff]
  %v639 = vld [vmem:[%s3 + $0x28] sm:$0xff]
  %v640 = vld [vmem:[%s3 + $0x30] sm:$0xff]
  %v641 = vld [vmem:[%s3 + $0x38] sm:$0xff]
  %v642 = vld [vmem:[%s3 + $0x40] sm:$0xff]
  %v643 = vld [vmem:[%s3 + $0x48] sm:$0xff]
  %v644 = vld [vmem:[%s3 + $0x50] sm:$0xff]
  %v645 = vld [vmem:[%s3 + $0x58] sm:$0xff]
  %v646 = vld [vmem:[%s3 + $0x60] sm:$0xff]
  %v647 = vld [vmem:[%s3 + $0x68] sm:$0xff]
  %v648 = vld [vmem:[%s3 + $0x70] sm:$0xff]
  %v649 = vld [vmem:[%s3 + $0x78] sm:$0xff]
  %v650 = vld [vmem:[%s4] sm:$0x3]
  %v652 = vperm.slane %v650, 0
  %v653 = vperm.slane %v650, 1
  %v672 = vunpack.c.l.b16 %v634
  %v673 = vunpack.c.h.b16 %v634
  %v674 = vunpack.c.l.b16 %v635
  %v675 = vunpack.c.h.b16 %v635
  %v676 = vunpack.c.l.b16 %v636
  %v677 = vunpack.c.h.b16 %v636
  %v678 = vunpack.c.l.b16 %v637
  %v679 = vunpack.c.h.b16 %v637
  %v680 = vunpack.c.l.b16 %v638
  %v681 = vunpack.c.h.b16 %v638
  %v682 = vunpack.c.l.b16 %v639
  %v683 = vunpack.c.h.b16 %v639
  %v684 = vunpack.c.l.b16 %v640
  %v685 = vunpack.c.h.b16 %v640
  %v686 = vunpack.c.l.b16 %v641
  %v687 = vunpack.c.h.b16 %v641
  %v688 = vunpack.c.l.b16 %v642
  %v689 = vunpack.c.h.b16 %v642
  %v690 = vunpack.c.l.b16 %v643
  %v691 = vunpack.c.h.b16 %v643
  %v692 = vunpack.c.l.b16 %v644
  %v693 = vunpack.c.h.b16 %v644
  %v694 = vunpack.c.l.b16 %v645
  %v695 = vunpack.c.h.b16 %v645
  %v696 = vunpack.c.l.b16 %v646
  %v697 = vunpack.c.h.b16 %v646
  %v698 = vunpack.c.l.b16 %v647
  %v699 = vunpack.c.h.b16 %v647
  %v700 = vunpack.c.l.b16 %v648
  %v701 = vunpack.c.h.b16 %v648
  %v702 = vunpack.c.l.b16 %v649
  %v703 = vunpack.c.h.b16 %v649
  %v704 = vpack.c.b16 %v674, %v672
  %v705 = vpack.c.b16 %v675, %v673
  %v706 = vpack.c.b16 %v678, %v676
  %v707 = vpack.c.b16 %v679, %v677
  %v708 = vpack.c.b16 %v682, %v680
  %v709 = vpack.c.b16 %v683, %v681
  %v710 = vpack.c.b16 %v686, %v684
  %v711 = vpack.c.b16 %v687, %v685
  %v712 = vpack.c.b16 %v690, %v688
  %v713 = vpack.c.b16 %v691, %v689
  %v714 = vpack.c.b16 %v694, %v692
  %v715 = vpack.c.b16 %v695, %v693
  %v716 = vpack.c.b16 %v698, %v696
  %v717 = vpack.c.b16 %v699, %v697
  %v718 = vpack.c.b16 %v702, %v700
  %v719 = vpack.c.b16 %v703, %v701
  %736 = vmatpush.bf16.msra.mxu0 %v718
  %737 = vmatpush.bf16.msra.mxu0 %v716
  %738 = vmatpush.bf16.msra.mxu0 %v714
  %739 = vmatpush.bf16.msra.mxu0 %v712
  %740 = vmatpush.bf16.msra.mxu0 %v710
  %741 = vmatpush.bf16.msra.mxu0 %v708
  %742 = vmatpush.bf16.msra.mxu0 %v706
  %743 = vmatpush.bf16.msra.mxu0 %v704
  %744 = vmatmul.bf16.gmra.mxu0 %v633
  %v745 = vpop.f32.mrf.mxu0
  %v746 = vadd.f32 %v652, %v745
  %v747 = vpop.f32.mrf.mxu0
  %v748 = vadd.f32 %v652, %v747
  %749 = vdwg.mxu0
  %750 = vmatpush.bf16.msra.mxu0 %v719
  %751 = vmatpush.bf16.msra.mxu0 %v717
  %752 = vmatpush.bf16.msra.mxu0 %v715
  %753 = vmatpush.bf16.msra.mxu0 %v713
  %754 = vmatpush.bf16.msra.mxu0 %v711
  %755 = vmatpush.bf16.msra.mxu0 %v709
  %756 = vmatpush.bf16.msra.mxu0 %v707
  %757 = vmatpush.bf16.msra.mxu0 %v705
  %758 = vmatmul.bf16.gmra.mxu0 %v633
  %v759 = vpop.f32.mrf.mxu0
  %v760 = vadd.f32 %v653, %v759
  %v761 = vpop.f32.mrf.mxu0
  %v762 = vadd.f32 %v653, %v761
  %763 = vdwg.mxu0
  %764 = vst [vmem:[%s5] sm:$0xff] %v746
  %765 = vst [vmem:[%s5 + $0x8] sm:$0xff] %v760
  %766 = vst [vmem:[%s5 + $0x10] sm:$0xff] %v748
  %767 = vst [vmem:[%s5 + $0x18] sm:$0xff] %v762
  // Predicated region
  $region22: #{_forward.3} parent=0 // pred_check
    _
  $region23: #{_forward.3} parent=0 // pred_check_branch
    %769 = sbr.rel (0) target = $region25
  $region24: #{_forward.3} parent=0 // pred_region
    _
  $region25: #{_forward.3} parent=0 // pred_fallthru
    _
  // Predicated region
  $region26: #{_forward.3} parent=0 // pred_check
    _
  $region27: #{_forward.3} parent=0 // pred_check_branch
    %771 = sbr.rel (0) target = $region29
  $region28: #{_forward.3} parent=0 // pred_region
    _
  $region29: #{_forward.3} parent=0 // pred_fallthru
    _

// kernel: _forward.2
$region0: #{_forward.2}
  #allocation0 [shape = 'u32[]', space=smem, size = 0x4, offset = 0x4, fixed_abs, tag = 'smem constant byte address 0x4 - core index']
  #allocation1 [shape = 'u32[72,128]{1,0:T(1,128)}', space=vmem, size = 0x9000, scoped, tag = 'internal scratch']
  %s0 = inlined_call_operand.vmem [shape: f32[16,128], index: 0, kind: input, shape index: {}]
  %s1 = inlined_call_operand.hbm [shape: bf16[7,128,128], index: 1, kind: input, shape index: {}]
  %s2 = inlined_call_operand.vmem [shape: f32[7,1,128], index: 2, kind: input, shape index: {}]
  %s3 = inlined_call_operand.vmem [shape: bf16[128,256], index: 3, kind: input, shape index: {}]
  %s4 = inlined_call_operand.vmem [shape: f32[1,256], index: 4, kind: input, shape index: {}]
  %s5 = inlined_call_operand.vmem [shape: f32[16,256], index: 5, kind: output, shape index: {}]
  %s6 = sld [smem:[#allocation0]]
  $region34: #{_forward.2} parent=0
    _
  %s8 = ssub.s32 1, %s6
  %s9 = scalar_select 0, %s8, %s6
  $region1: #{_forward.2} parent=0
    #allocation2 [shape = 'u8[229376]{0}', space=vmem, size = 0x38000, scoped, tag = 'input window, operand 1, single buffered']
    #allocation3 [shape = 's32[1]{0}', space=sflag, size = 0x4, scoped, tag = 'scoped memory for _forward.2']
    %10 = vsyncpa [#allocation3], 0
    // Predicated region
    $region2: #{_forward.2} parent=1 // pred_check
      _
    $region3: #{_forward.2} parent=1 // pred_check_branch
      %12 = sbr.rel (0) target = $region5
    $region4: #{_forward.2} parent=1 // pred_region
      _
    $region5: #{_forward.2} parent=1 // pred_fallthru
      _
    // Predicated region
    $region6: #{_forward.2} parent=1 // pred_check
      _
    $region7: #{_forward.2} parent=1 // pred_check_branch
      %14 = sbr.rel (0) target = $region9
    $region8: #{_forward.2} parent=1 // pred_region
      %16 = vsyncadd [#allocation3], 0
      %s17 = sshll.u32 %s1, 4
      %s18 = int_to_ptr.hbm [resolvable:$true] %s17
      %s19 = sshll.u32 [#allocation2], 4
      %s20 = int_to_ptr.vmem [resolvable:$true] %s19
      %25 = dma.hbm_to_vmem [thread:$0]  %s18, 7168, %s20, [#allocation3], 64, 64, 4
    $region9: #{_forward.2} parent=1 // pred_fallthru
      _
    // Predicated region
    $region10: #{_forward.2} parent=1 // pred_check
      _
    $region11: #{_forward.2} parent=1 // pred_check_branch
      %27 = sbr.rel (0) target = $region13
    $region12: #{_forward.2} parent=1 // pred_region
      _
    $region13: #{_forward.2} parent=1 // pred_fallthru
      _
    // Predicated region
    $region14: #{_forward.2} parent=1 // pred_check
      _
    $region15: #{_forward.2} parent=1 // pred_check_branch
      %29 = sbr.rel (0) target = $region17
    $region16: #{_forward.2} parent=1 // pred_region
      _
    $region17: #{_forward.2} parent=1 // pred_fallthru
      _
    // Predicated region
    $region18: #{_forward.2} parent=1 // pred_check
      _
    $region19: #{_forward.2} parent=1 // pred_check_branch
      %31 = sbr.rel (0) target = $region21
    $region20: #{_forward.2} parent=1 // pred_region
      _
    $region21: #{_forward.2} parent=1 // pred_fallthru
      _
    // Predicated region
    $region22: #{_forward.2} parent=1 // pred_check
      _
    $region23: #{_forward.2} parent=1 // pred_check_branch
      %33 = sbr.rel (0) target = $region25
    $region24: #{_forward.2} parent=1 // pred_region
      %35 = dma.done [#allocation3], 7168
    $region25: #{_forward.2} parent=1 // pred_fallthru
      _
    %v36 = vld [vmem:[%s0] sm:$0xff]
    %v37 = vld [vmem:[%s0 + $0x8] sm:$0xff]
    %v38 = vpack.c.bf16 %v37, %v36
    %v39 = vld [vmem:[#allocation2] sm:$0xf]
    %v40 = vld [vmem:[#allocation2 + $0x4] sm:$0xf]
    %v41 = vld [vmem:[#allocation2 + $0x8] sm:$0xf]
    %v42 = vld [vmem:[#allocation2 + $0xc] sm:$0xf]
    %v43 = vld [vmem:[#allocation2 + $0x10] sm:$0xf]
    %v44 = vld [vmem:[#allocation2 + $0x14] sm:$0xf]
    %v45 = vld [vmem:[#allocation2 + $0x18] sm:$0xf]
    %v46 = vld [vmem:[#allocation2 + $0x1c] sm:$0xf]
    %v47 = vld [vmem:[#allocation2 + $0x20] sm:$0xf]
    %v48 = vld [vmem:[#allocation2 + $0x24] sm:$0xf]
    %v49 = vld [vmem:[#allocation2 + $0x28] sm:$0xf]
    %v50 = vld [vmem:[#allocation2 + $0x2c] sm:$0xf]
    %v51 = vld [vmem:[#allocation2 + $0x30] sm:$0xf]
    %v52 = vld [vmem:[#allocation2 + $0x34] sm:$0xf]
    %v53 = vld [vmem:[#allocation2 + $0x38] sm:$0xf]
    %v54 = vld [vmem:[#allocation2 + $0x3c] sm:$0xf]
    %v55 = vld [vmem:[%s2] sm:$0x1]
    %v57 = vperm.slane %v55, 0
    %v75 = vunpack.c.l.b16 %v39
    %v76 = vunpack.c.l.b16 %v40
    %v77 = vunpack.c.l.b16 %v41
    %v78 = vunpack.c.l.b16 %v42
    %v79 = vunpack.c.l.b16 %v43
    %v80 = vunpack.c.l.b16 %v44
    %v81 = vunpack.c.l.b16 %v45
    %v82 = vunpack.c.l.b16 %v46
    %v83 = vunpack.c.l.b16 %v47
    %v84 = vunpack.c.l.b16 %v48
    %v85 = vunpack.c.l.b16 %v49
    %v86 = vunpack.c.l.b16 %v50
    %v87 = vunpack.c.l.b16 %v51
    %v88 = vunpack.c.l.b16 %v52
    %v89 = vunpack.c.l.b16 %v53
    %v90 = vunpack.c.l.b16 %v54
    %v91 = vpack.c.b16 %v76, %v75
    %v92 = vpack.c.b16 %v78, %v77
    %v93 = vpack.c.b16 %v80, %v79
    %v94 = vpack.c.b16 %v82, %v81
    %v95 = vpack.c.b16 %v84, %v83
    %v96 = vpack.c.b16 %v86, %v85
    %v97 = vpack.c.b16 %v88, %v87
    %v98 = vpack.c.b16 %v90, %v89
    %107 = vmatpush.bf16.msra.mxu0 %v98
    %108 = vmatpush.bf16.msra.mxu0 %v97
    %109 = vmatpush.bf16.msra.mxu0 %v96
    %110 = vmatpush.bf16.msra.mxu0 %v95
    %111 = vmatpush.bf16.msra.mxu0 %v94
    %112 = vmatpush.bf16.msra.mxu0 %v93
    %113 = vmatpush.bf16.msra.mxu0 %v92
    %114 = vmatpush.bf16.msra.mxu0 %v91
    %115 = vmatmul.bf16.gmra.mxu0 %v38
    %v116 = vpop.f32.mrf.mxu0
    %v117 = vadd.f32 %v57, %v116
    %v118 = vpop.f32.mrf.mxu0
    %v119 = vadd.f32 %v57, %v118
    %120 = vdwg.mxu0
    %v121 = vmax.f32 %v117, 0.0
    %v122 = vmax.f32 %v119, 0.0
    %v123 = vpack.c.bf16 %v122, %v121
    %s124 = scalar_lea.vmem [#allocation2], 64
    %v125 = vld [vmem:[%s124] sm:$0xf]
    %v126 = vld [vmem:[%s124 + $0x4] sm:$0xf]
    %v127 = vld [vmem:[%s124 + $0x8] sm:$0xf]
    %v128 = vld [vmem:[%s124 + $0xc] sm:$0xf]
    %v129 = vld [vmem:[%s124 + $0x10] sm:$0xf]
    %v130 = vld [vmem:[%s124 + $0x14] sm:$0xf]
    %v131 = vld [vmem:[%s124 + $0x18] sm:$0xf]
    %v132 = vld [vmem:[%s124 + $0x1c] sm:$0xf]
    %v133 = vld [vmem:[%s124 + $0x20] sm:$0xf]
    %v134 = vld [vmem:[%s124 + $0x24] sm:$0xf]
    %v135 = vld [vmem:[%s124 + $0x28] sm:$0xf]
    %v136 = vld [vmem:[%s124 + $0x2c] sm:$0xf]
    %v137 = vld [vmem:[%s124 + $0x30] sm:$0xf]
    %v138 = vld [vmem:[%s124 + $0x34] sm:$0xf]
    %v139 = vld [vmem:[%s124 + $0x38] sm:$0xf]
    %v140 = vld [vmem:[%s124 + $0x3c] sm:$0xf]
    %s141 = scalar_lea.vmem %s2, 1
    %v142 = vld [vmem:[%s141] sm:$0x1]
    %v144 = vperm.slane %v142, 0
    %v162 = vunpack.c.l.b16 %v125
    %v163 = vunpack.c.l.b16 %v126
    %v164 = vunpack.c.l.b16 %v127
    %v165 = vunpack.c.l.b16 %v128
    %v166 = vunpack.c.l.b16 %v129
    %v167 = vunpack.c.l.b16 %v130
    %v168 = vunpack.c.l.b16 %v131
    %v169 = vunpack.c.l.b16 %v132
    %v170 = vunpack.c.l.b16 %v133
    %v171 = vunpack.c.l.b16 %v134
    %v172 = vunpack.c.l.b16 %v135
    %v173 = vunpack.c.l.b16 %v136
    %v174 = vunpack.c.l.b16 %v137
    %v175 = vunpack.c.l.b16 %v138
    %v176 = vunpack.c.l.b16 %v139
    %v177 = vunpack.c.l.b16 %v140
    %v178 = vpack.c.b16 %v163, %v162
    %v179 = vpack.c.b16 %v165, %v164
    %v180 = vpack.c.b16 %v167, %v166
    %v181 = vpack.c.b16 %v169, %v168
    %v182 = vpack.c.b16 %v171, %v170
    %v183 = vpack.c.b16 %v173, %v172
    %v184 = vpack.c.b16 %v175, %v174
    %v185 = vpack.c.b16 %v177, %v176
    %194 = vmatpush.bf16.msra.mxu0 %v185
    %195 = vmatpush.bf16.msra.mxu0 %v184
    %196 = vmatpush.bf16.msra.mxu0 %v183
    %197 = vmatpush.bf16.msra.mxu0 %v182
    %198 = vmatpush.bf16.msra.mxu0 %v181
    %199 = vmatpush.bf16.msra.mxu0 %v180
    %200 = vmatpush.bf16.msra.mxu0 %v179
    %201 = vmatpush.bf16.msra.mxu0 %v178
    %202 = vmatmul.bf16.gmra.mxu0 %v123
    %v203 = vpop.f32.mrf.mxu0
    %v204 = vadd.f32 %v144, %v203
    %v205 = vpop.f32.mrf.mxu0
    %v206 = vadd.f32 %v144, %v205
    %207 = vdwg.mxu0
    %v208 = vmax.f32 %v204, 0.0
    %v209 = vmax.f32 %v206, 0.0
    %v210 = vpack.c.bf16 %v209, %v208
    %s211 = scalar_lea.vmem [#allocation2], 128
    %v212 = vld [vmem:[%s211] sm:$0xf]
    %v213 = vld [vmem:[%s211 + $0x4] sm:$0xf]
    %v214 = vld [vmem:[%s211 + $0x8] sm:$0xf]
    %v215 = vld [vmem:[%s211 + $0xc] sm:$0xf]
    %v216 = vld [vmem:[%s211 + $0x10] sm:$0xf]
    %v217 = vld [vmem:[%s211 + $0x14] sm:$0xf]
    %v218 = vld [vmem:[%s211 + $0x18] sm:$0xf]
    %v219 = vld [vmem:[%s211 + $0x1c] sm:$0xf]
    %v220 = vld [vmem:[%s211 + $0x20] sm:$0xf]
    %v221 = vld [vmem:[%s211 + $0x24] sm:$0xf]
    %v222 = vld [vmem:[%s211 + $0x28] sm:$0xf]
    %v223 = vld [vmem:[%s211 + $0x2c] sm:$0xf]
    %v224 = vld [vmem:[%s211 + $0x30] sm:$0xf]
    %v225 = vld [vmem:[%s211 + $0x34] sm:$0xf]
    %v226 = vld [vmem:[%s211 + $0x38] sm:$0xf]
    %v227 = vld [vmem:[%s211 + $0x3c] sm:$0xf]
    %s228 = scalar_lea.vmem %s2, 2
    %v229 = vld [vmem:[%s228] sm:$0x1]
    %v231 = vperm.slane %v229, 0
    %v249 = vunpack.c.l.b16 %v212
    %v250 = vunpack.c.l.b16 %v213
    %v251 = vunpack.c.l.b16 %v214
    %v252 = vunpack.c.l.b16 %v215
    %v253 = vunpack.c.l.b16 %v216
    %v254 = vunpack.c.l.b16 %v217
    %v255 = vunpack.c.l.b16 %v218
    %v256 = vunpack.c.l.b16 %v219
    %v257 = vunpack.c.l.b16 %v220
    %v258 = vunpack.c.l.b16 %v221
    %v259 = vunpack.c.l.b16 %v222
    %v260 = vunpack.c.l.b16 %v223
    %v261 = vunpack.c.l.b16 %v224
    %v262 = vunpack.c.l.b16 %v225
    %v263 = vunpack.c.l.b16 %v226
    %v264 = vunpack.c.l.b16 %v227
    %v265 = vpack.c.b16 %v250, %v249
    %v266 = vpack.c.b16 %v252, %v251
    %v267 = vpack.c.b16 %v254, %v253
    %v268 = vpack.c.b16 %v256, %v255
    %v269 = vpack.c.b16 %v258, %v257
    %v270 = vpack.c.b16 %v260, %v259
    %v271 = vpack.c.b16 %v262, %v261
    %v272 = vpack.c.b16 %v264, %v263
    %281 = vmatpush.bf16.msra.mxu0 %v272
    %282 = vmatpush.bf16.msra.mxu0 %v271
    %283 = vmatpush.bf16.msra.mxu0 %v270
    %284 = vmatpush.bf16.msra.mxu0 %v269
    %285 = vmatpush.bf16.msra.mxu0 %v268
    %286 = vmatpush.bf16.msra.mxu0 %v267
    %287 = vmatpush.bf16.msra.mxu0 %v266
    %288 = vmatpush.bf16.msra.mxu0 %v265
    %289 = vmatmul.bf16.gmra.mxu0 %v210
    %v290 = vpop.f32.mrf.mxu0
    %v291 = vadd.f32 %v231, %v290
    %v292 = vpop.f32.mrf.mxu0
    %v293 = vadd.f32 %v231, %v292
    %294 = vdwg.mxu0
    %v295 = vmax.f32 %v291, 0.0
    %v296 = vmax.f32 %v293, 0.0
    %v297 = vpack.c.bf16 %v296, %v295
    %s298 = scalar_lea.vmem [#allocation2], 192
    %v299 = vld [vmem:[%s298] sm:$0xf]
    %v300 = vld [vmem:[%s298 + $0x4] sm:$0xf]
    %v301 = vld [vmem:[%s298 + $0x8] sm:$0xf]
    %v302 = vld [vmem:[%s298 + $0xc] sm:$0xf]
    %v303 = vld [vmem:[%s298 + $0x10] sm:$0xf]
    %v304 = vld [vmem:[%s298 + $0x14] sm:$0xf]
    %v305 = vld [vmem:[%s298 + $0x18] sm:$0xf]
    %v306 = vld [vmem:[%s298 + $0x1c] sm:$0xf]
    %v307 = vld [vmem:[%s298 + $0x20] sm:$0xf]
    %v308 = vld [vmem:[%s298 + $0x24] sm:$0xf]
    %v309 = vld [vmem:[%s298 + $0x28] sm:$0xf]
    %v310 = vld [vmem:[%s298 + $0x2c] sm:$0xf]
    %v311 = vld [vmem:[%s298 + $0x30] sm:$0xf]
    %v312 = vld [vmem:[%s298 + $0x34] sm:$0xf]
    %v313 = vld [vmem:[%s298 + $0x38] sm:$0xf]
    %v314 = vld [vmem:[%s298 + $0x3c] sm:$0xf]
    %s315 = scalar_lea.vmem %s2, 3
    %v316 = vld [vmem:[%s315] sm:$0x1]
    %v318 = vperm.slane %v316, 0
    %v336 = vunpack.c.l.b16 %v299
    %v337 = vunpack.c.l.b16 %v300
    %v338 = vunpack.c.l.b16 %v301
    %v339 = vunpack.c.l.b16 %v302
    %v340 = vunpack.c.l.b16 %v303
    %v341 = vunpack.c.l.b16 %v304
    %v342 = vunpack.c.l.b16 %v305
    %v343 = vunpack.c.l.b16 %v306
    %v344 = vunpack.c.l.b16 %v307
    %v345 = vunpack.c.l.b16 %v308
    %v346 = vunpack.c.l.b16 %v309
    %v347 = vunpack.c.l.b16 %v310
    %v348 = vunpack.c.l.b16 %v311
    %v349 = vunpack.c.l.b16 %v312
    %v350 = vunpack.c.l.b16 %v313
    %v351 = vunpack.c.l.b16 %v314
    %v352 = vpack.c.b16 %v337, %v336
    %v353 = vpack.c.b16 %v339, %v338
    %v354 = vpack.c.b16 %v341, %v340
    %v355 = vpack.c.b16 %v343, %v342
    %v356 = vpack.c.b16 %v345, %v344
    %v357 = vpack.c.b16 %v347, %v346
    %v358 = vpack.c.b16 %v349, %v348
    %v359 = vpack.c.b16 %v351, %v350
    %368 = vmatpush.bf16.msra.mxu0 %v359
    %369 = vmatpush.bf16.msra.mxu0 %v358
    %370 = vmatpush.bf16.msra.mxu0 %v357
    %371 = vmatpush.bf16.msra.mxu0 %v356
    %372 = vmatpush.bf16.msra.mxu0 %v355
    %373 = vmatpush.bf16.msra.mxu0 %v354
    %374 = vmatpush.bf16.msra.mxu0 %v353
    %375 = vmatpush.bf16.msra.mxu0 %v352
    %376 = vmatmul.bf16.gmra.mxu0 %v297
    %v377 = vpop.f32.mrf.mxu0
    %v378 = vadd.f32 %v318, %v377
    %v379 = vpop.f32.mrf.mxu0
    %v380 = vadd.f32 %v318, %v379
    %381 = vdwg.mxu0
    %v382 = vadd.f32 %v378, %v121
    %v383 = vadd.f32 %v380, %v122
    %v384 = vmax.f32 %v382, 0.0
    %v385 = vmax.f32 %v383, 0.0
    %v386 = vpack.c.bf16 %v385, %v384
    %s387 = scalar_lea.vmem [#allocation2], 256
    %v388 = vld [vmem:[%s387] sm:$0xf]
    %v389 = vld [vmem:[%s387 + $0x4] sm:$0xf]
    %v390 = vld [vmem:[%s387 + $0x8] sm:$0xf]
    %v391 = vld [vmem:[%s387 + $0xc] sm:$0xf]
    %v392 = vld [vmem:[%s387 + $0x10] sm:$0xf]
    %v393 = vld [vmem:[%s387 + $0x14] sm:$0xf]
    %v394 = vld [vmem:[%s387 + $0x18] sm:$0xf]
    %v395 = vld [vmem:[%s387 + $0x1c] sm:$0xf]
    %v396 = vld [vmem:[%s387 + $0x20] sm:$0xf]
    %v397 = vld [vmem:[%s387 + $0x24] sm:$0xf]
    %v398 = vld [vmem:[%s387 + $0x28] sm:$0xf]
    %v399 = vld [vmem:[%s387 + $0x2c] sm:$0xf]
    %v400 = vld [vmem:[%s387 + $0x30] sm:$0xf]
    %v401 = vld [vmem:[%s387 + $0x34] sm:$0xf]
    %v402 = vld [vmem:[%s387 + $0x38] sm:$0xf]
    %v403 = vld [vmem:[%s387 + $0x3c] sm:$0xf]
    %s404 = scalar_lea.vmem %s2, 4
    %v405 = vld [vmem:[%s404] sm:$0x1]
    %v407 = vperm.slane %v405, 0
    %v425 = vunpack.c.l.b16 %v388
    %v426 = vunpack.c.l.b16 %v389
    %v427 = vunpack.c.l.b16 %v390
    %v428 = vunpack.c.l.b16 %v391
    %v429 = vunpack.c.l.b16 %v392
    %v430 = vunpack.c.l.b16 %v393
    %v431 = vunpack.c.l.b16 %v394
    %v432 = vunpack.c.l.b16 %v395
    %v433 = vunpack.c.l.b16 %v396
    %v434 = vunpack.c.l.b16 %v397
    %v435 = vunpack.c.l.b16 %v398
    %v436 = vunpack.c.l.b16 %v399
    %v437 = vunpack.c.l.b16 %v400
    %v438 = vunpack.c.l.b16 %v401
    %v439 = vunpack.c.l.b16 %v402
    %v440 = vunpack.c.l.b16 %v403
    %v441 = vpack.c.b16 %v426, %v425
    %v442 = vpack.c.b16 %v428, %v427
    %v443 = vpack.c.b16 %v430, %v429
    %v444 = vpack.c.b16 %v432, %v431
    %v445 = vpack.c.b16 %v434, %v433
    %v446 = vpack.c.b16 %v436, %v435
    %v447 = vpack.c.b16 %v438, %v437
    %v448 = vpack.c.b16 %v440, %v439
    %457 = vmatpush.bf16.msra.mxu0 %v448
    %458 = vmatpush.bf16.msra.mxu0 %v447
    %459 = vmatpush.bf16.msra.mxu0 %v446
    %460 = vmatpush.bf16.msra.mxu0 %v445
    %461 = vmatpush.bf16.msra.mxu0 %v444
    %462 = vmatpush.bf16.msra.mxu0 %v443
    %463 = vmatpush.bf16.msra.mxu0 %v442
    %464 = vmatpush.bf16.msra.mxu0 %v441
    %465 = vmatmul.bf16.gmra.mxu0 %v386
    %v466 = vpop.f32.mrf.mxu0
    %v467 = vadd.f32 %v407, %v466
    %v468 = vpop.f32.mrf.mxu0
    %v469 = vadd.f32 %v407, %v468
    %470 = vdwg.mxu0
    %v471 = vmax.f32 %v467, 0.0
    %v472 = vmax.f32 %v469, 0.0
    %v473 = vpack.c.bf16 %v472, %v471
    %s474 = scalar_lea.vmem [#allocation2], 320
    %v475 = vld [vmem:[%s474] sm:$0xf]
    %v476 = vld [vmem:[%s474 + $0x4] sm:$0xf]
    %v477 = vld [vmem:[%s474 + $0x8] sm:$0xf]
    %v478 = vld [vmem:[%s474 + $0xc] sm:$0xf]
    %v479 = vld [vmem:[%s474 + $0x10] sm:$0xf]
    %v480 = vld [vmem:[%s474 + $0x14] sm:$0xf]
    %v481 = vld [vmem:[%s474 + $0x18] sm:$0xf]
    %v482 = vld [vmem:[%s474 + $0x1c] sm:$0xf]
    %v483 = vld [vmem:[%s474 + $0x20] sm:$0xf]
    %v484 = vld [vmem:[%s474 + $0x24] sm:$0xf]
    %v485 = vld [vmem:[%s474 + $0x28] sm:$0xf]
    %v486 = vld [vmem:[%s474 + $0x2c] sm:$0xf]
    %v487 = vld [vmem:[%s474 + $0x30] sm:$0xf]
    %v488 = vld [vmem:[%s474 + $0x34] sm:$0xf]
    %v489 = vld [vmem:[%s474 + $0x38] sm:$0xf]
    %v490 = vld [vmem:[%s474 + $0x3c] sm:$0xf]
    %s491 = scalar_lea.vmem %s2, 5
    %v492 = vld [vmem:[%s491] sm:$0x1]
    %v494 = vperm.slane %v492, 0
    %v512 = vunpack.c.l.b16 %v475
    %v513 = vunpack.c.l.b16 %v476
    %v514 = vunpack.c.l.b16 %v477
    %v515 = vunpack.c.l.b16 %v478
    %v516 = vunpack.c.l.b16 %v479
    %v517 = vunpack.c.l.b16 %v480
    %v518 = vunpack.c.l.b16 %v481
    %v519 = vunpack.c.l.b16 %v482
    %v520 = vunpack.c.l.b16 %v483
    %v521 = vunpack.c.l.b16 %v484
    %v522 = vunpack.c.l.b16 %v485
    %v523 = vunpack.c.l.b16 %v486
    %v524 = vunpack.c.l.b16 %v487
    %v525 = vunpack.c.l.b16 %v488
    %v526 = vunpack.c.l.b16 %v489
    %v527 = vunpack.c.l.b16 %v490
    %v528 = vpack.c.b16 %v513, %v512
    %v529 = vpack.c.b16 %v515, %v514
    %v530 = vpack.c.b16 %v517, %v516
    %v531 = vpack.c.b16 %v519, %v518
    %v532 = vpack.c.b16 %v521, %v520
    %v533 = vpack.c.b16 %v523, %v522
    %v534 = vpack.c.b16 %v525, %v524
    %v535 = vpack.c.b16 %v527, %v526
    %544 = vmatpush.bf16.msra.mxu0 %v535
    %545 = vmatpush.bf16.msra.mxu0 %v534
    %546 = vmatpush.bf16.msra.mxu0 %v533
    %547 = vmatpush.bf16.msra.mxu0 %v532
    %548 = vmatpush.bf16.msra.mxu0 %v531
    %549 = vmatpush.bf16.msra.mxu0 %v530
    %550 = vmatpush.bf16.msra.mxu0 %v529
    %551 = vmatpush.bf16.msra.mxu0 %v528
    %552 = vmatmul.bf16.gmra.mxu0 %v473
    %v553 = vpop.f32.mrf.mxu0
    %v554 = vadd.f32 %v494, %v553
    %v555 = vpop.f32.mrf.mxu0
    %v556 = vadd.f32 %v494, %v555
    %557 = vdwg.mxu0
    %v558 = vmax.f32 %v554, 0.0
    %v559 = vmax.f32 %v556, 0.0
    %v560 = vpack.c.bf16 %v559, %v558
    %s561 = scalar_lea.vmem [#allocation2], 384
    %v562 = vld [vmem:[%s561] sm:$0xf]
    %v563 = vld [vmem:[%s561 + $0x4] sm:$0xf]
    %v564 = vld [vmem:[%s561 + $0x8] sm:$0xf]
    %v565 = vld [vmem:[%s561 + $0xc] sm:$0xf]
    %v566 = vld [vmem:[%s561 + $0x10] sm:$0xf]
    %v567 = vld [vmem:[%s561 + $0x14] sm:$0xf]
    %v568 = vld [vmem:[%s561 + $0x18] sm:$0xf]
    %v569 = vld [vmem:[%s561 + $0x1c] sm:$0xf]
    %v570 = vld [vmem:[%s561 + $0x20] sm:$0xf]
    %v571 = vld [vmem:[%s561 + $0x24] sm:$0xf]
    %v572 = vld [vmem:[%s561 + $0x28] sm:$0xf]
    %v573 = vld [vmem:[%s561 + $0x2c] sm:$0xf]
    %v574 = vld [vmem:[%s561 + $0x30] sm:$0xf]
    %v575 = vld [vmem:[%s561 + $0x34] sm:$0xf]
    %v576 = vld [vmem:[%s561 + $0x38] sm:$0xf]
    %v577 = vld [vmem:[%s561 + $0x3c] sm:$0xf]
    %s578 = scalar_lea.vmem %s2, 6
    %v579 = vld [vmem:[%s578] sm:$0x1]
    %v581 = vperm.slane %v579, 0
    %v599 = vunpack.c.l.b16 %v562
    %v600 = vunpack.c.l.b16 %v563
    %v601 = vunpack.c.l.b16 %v564
    %v602 = vunpack.c.l.b16 %v565
    %v603 = vunpack.c.l.b16 %v566
    %v604 = vunpack.c.l.b16 %v567
    %v605 = vunpack.c.l.b16 %v568
    %v606 = vunpack.c.l.b16 %v569
    %v607 = vunpack.c.l.b16 %v570
    %v608 = vunpack.c.l.b16 %v571
    %v609 = vunpack.c.l.b16 %v572
    %v610 = vunpack.c.l.b16 %v573
    %v611 = vunpack.c.l.b16 %v574
    %v612 = vunpack.c.l.b16 %v575
    %v613 = vunpack.c.l.b16 %v576
    %v614 = vunpack.c.l.b16 %v577
    %v615 = vpack.c.b16 %v600, %v599
    %v616 = vpack.c.b16 %v602, %v601
    %v617 = vpack.c.b16 %v604, %v603
    %v618 = vpack.c.b16 %v606, %v605
    %v619 = vpack.c.b16 %v608, %v607
    %v620 = vpack.c.b16 %v610, %v609
    %v621 = vpack.c.b16 %v612, %v611
    %v622 = vpack.c.b16 %v614, %v613
    %631 = vmatpush.bf16.msra.mxu0 %v622
    %632 = vmatpush.bf16.msra.mxu0 %v621
    %633 = vmatpush.bf16.msra.mxu0 %v620
    %634 = vmatpush.bf16.msra.mxu0 %v619
    %635 = vmatpush.bf16.msra.mxu0 %v618
    %636 = vmatpush.bf16.msra.mxu0 %v617
    %637 = vmatpush.bf16.msra.mxu0 %v616
    %638 = vmatpush.bf16.msra.mxu0 %v615
    %639 = vmatmul.bf16.gmra.mxu0 %v560
    %v640 = vpop.f32.mrf.mxu0
    %v641 = vadd.f32 %v581, %v640
    %v642 = vpop.f32.mrf.mxu0
    %v643 = vadd.f32 %v581, %v642
    %644 = vdwg.mxu0
    %v645 = vadd.f32 %v641, %v384
    %v646 = vadd.f32 %v643, %v385
    %v647 = vmax.f32 %v645, 0.0
    %v648 = vmax.f32 %v646, 0.0
    %v649 = vpack.c.bf16 %v648, %v647
    %v650 = vld [vmem:[%s3] sm:$0xff]
    %v651 = vld [vmem:[%s3 + $0x8] sm:$0xff]
    %v652 = vld [vmem:[%s3 + $0x10] sm:$0xff]
    %v653 = vld [vmem:[%s3 + $0x18] sm:$0xff]
    %v654 = vld [vmem:[%s3 + $0x20] sm:$0xff]
    %v655 = vld [vmem:[%s3 + $0x28] sm:$0xff]
    %v656 = vld [vmem:[%s3 + $0x30] sm:$0xff]
    %v657 = vld [vmem:[%s3 + $0x38] sm:$0xff]
    %v658 = vld [vmem:[%s3 + $0x40] sm:$0xff]
    %v659 = vld [vmem:[%s3 + $0x48] sm:$0xff]
    %v660 = vld [vmem:[%s3 + $0x50] sm:$0xff]
    %v661 = vld [vmem:[%s3 + $0x58] sm:$0xff]
    %v662 = vld [vmem:[%s3 + $0x60] sm:$0xff]
    %v663 = vld [vmem:[%s3 + $0x68] sm:$0xff]
    %v664 = vld [vmem:[%s3 + $0x70] sm:$0xff]
    %v665 = vld [vmem:[%s3 + $0x78] sm:$0xff]
    %v666 = vld [vmem:[%s4] sm:$0x3]
    %v668 = vperm.slane %v666, 0
    %v669 = vperm.slane %v666, 1
    %v688 = vunpack.c.l.b16 %v650
    %v689 = vunpack.c.h.b16 %v650
    %v690 = vunpack.c.l.b16 %v651
    %v691 = vunpack.c.h.b16 %v651
    %v692 = vunpack.c.l.b16 %v652
    %v693 = vunpack.c.h.b16 %v652
    %v694 = vunpack.c.l.b16 %v653
    %v695 = vunpack.c.h.b16 %v653
    %v696 = vunpack.c.l.b16 %v654
    %v697 = vunpack.c.h.b16 %v654
    %v698 = vunpack.c.l.b16 %v655
    %v699 = vunpack.c.h.b16 %v655
    %v700 = vunpack.c.l.b16 %v656
    %v701 = vunpack.c.h.b16 %v656
    %v702 = vunpack.c.l.b16 %v657
    %v703 = vunpack.c.h.b16 %v657
    %v704 = vunpack.c.l.b16 %v658
    %v705 = vunpack.c.h.b16 %v658
    %v706 = vunpack.c.l.b16 %v659
    %v707 = vunpack.c.h.b16 %v659
    %v708 = vunpack.c.l.b16 %v660
    %v709 = vunpack.c.h.b16 %v660
    %v710 = vunpack.c.l.b16 %v661
    %v711 = vunpack.c.h.b16 %v661
    %v712 = vunpack.c.l.b16 %v662
    %v713 = vunpack.c.h.b16 %v662
    %v714 = vunpack.c.l.b16 %v663
    %v715 = vunpack.c.h.b16 %v663
    %v716 = vunpack.c.l.b16 %v664
    %v717 = vunpack.c.h.b16 %v664
    %v718 = vunpack.c.l.b16 %v665
    %v719 = vunpack.c.h.b16 %v665
    %v720 = vpack.c.b16 %v690, %v688
    %v721 = vpack.c.b16 %v691, %v689
    %v722 = vpack.c.b16 %v694, %v692
    %v723 = vpack.c.b16 %v695, %v693
    %v724 = vpack.c.b16 %v698, %v696
    %v725 = vpack.c.b16 %v699, %v697
    %v726 = vpack.c.b16 %v702, %v700
    %v727 = vpack.c.b16 %v703, %v701
    %v728 = vpack.c.b16 %v706, %v704
    %v729 = vpack.c.b16 %v707, %v705
    %v730 = vpack.c.b16 %v710, %v708
    %v731 = vpack.c.b16 %v711, %v709
    %v732 = vpack.c.b16 %v714, %v712
    %v733 = vpack.c.b16 %v715, %v713
    %v734 = vpack.c.b16 %v718, %v716
    %v735 = vpack.c.b16 %v719, %v717
    %752 = vmatpush.bf16.msra.mxu0 %v734
    %753 = vmatpush.bf16.msra.mxu0 %v732
    %754 = vmatpush.bf16.msra.mxu0 %v730
    %755 = vmatpush.bf16.msra.mxu0 %v728
    %756 = vmatpush.bf16.msra.mxu0 %v726
    %757 = vmatpush.bf16.msra.mxu0 %v724
    %758 = vmatpush.bf16.msra.mxu0 %v722
    %759 = vmatpush.bf16.msra.mxu0 %v720
    %760 = vmatmul.bf16.gmra.mxu0 %v649
    %v761 = vpop.f32.mrf.mxu0
    %v762 = vadd.f32 %v668, %v761
    %v763 = vpop.f32.mrf.mxu0
    %v764 = vadd.f32 %v668, %v763
    %765 = vdwg.mxu0
    %766 = vmatpush.bf16.msra.mxu0 %v735
    %767 = vmatpush.bf16.msra.mxu0 %v733
    %768 = vmatpush.bf16.msra.mxu0 %v731
    %769 = vmatpush.bf16.msra.mxu0 %v729
    %770 = vmatpush.bf16.msra.mxu0 %v727
    %771 = vmatpush.bf16.msra.mxu0 %v725
    %772 = vmatpush.bf16.msra.mxu0 %v723
    %773 = vmatpush.bf16.msra.mxu0 %v721
    %774 = vmatmul.bf16.gmra.mxu0 %v649
    %v775 = vpop.f32.mrf.mxu0
    %v776 = vadd.f32 %v669, %v775
    %v777 = vpop.f32.mrf.mxu0
    %v778 = vadd.f32 %v669, %v777
    %779 = vdwg.mxu0
    %780 = vst [vmem:[%s5] sm:$0xff] %v762
    %781 = vst [vmem:[%s5 + $0x8] sm:$0xff] %v776
    %782 = vst [vmem:[%s5 + $0x10] sm:$0xff] %v764
    %783 = vst [vmem:[%s5 + $0x18] sm:$0xff] %v778
    // Predicated region
    $region26: #{_forward.2} parent=1 // pred_check
      _
    $region27: #{_forward.2} parent=1 // pred_check_branch
      %785 = sbr.rel (0) target = $region29
    $region28: #{_forward.2} parent=1 // pred_region
      _
    $region29: #{_forward.2} parent=1 // pred_fallthru
      _
    // Predicated region
    $region30: #{_forward.2} parent=1 // pred_check
      _
    $region31: #{_forward.2} parent=1 // pred_check_branch
      %787 = sbr.rel (0) target = $region33
    $region32: #{_forward.2} parent=1 // pred_region
      _
    $region33: #{_forward.2} parent=1 // pred_fallthru
      _
    %788 = vsyncpa [#allocation3], 1

</llo_original>
